<compile_context>
chip_gen: v6e
topology: v6e:2x2x1
jax: 0.10.0
libtpu: 0.0.40
codegen_flags: <defaults>
</compile_context>

<pallas_src>
import jax
import jax.numpy as jnp
from jax.experimental import pallas as pl
from jax.experimental.pallas import tpu as pltpu

LANE = 128


def _round_up(x, m):
    return (x + m - 1) // m * m


def _num_tensorcores():
    """2 TensorCores per chip on v7x, 1 on v5e/v6e. Conservative fallback: 1."""
    try:
        kind = jax.devices()[0].device_kind.lower()
    except Exception:
        return 1
    return 2 if "v7" in kind else 1


def molecule_model_kernel(x_ref, we_ref, be_ref, w1_ref, b1_ref, w2_ref, b2_ref,
                          out_ref):
    """One batch tile: encoder Linear+ReLU -> [Dropout(id), Linear, ReLU, Dropout(id), Linear] -> Sigmoid."""
    # In-kernel f32 -> bf16 cast (VALU slot has slack; avoids a wrapper-side pad/cast kernel).
    x = x_ref[...].astype(jnp.bfloat16)                                 # [TILE_M, F] bf16

    # Simplified encoder: enc = ReLU(x @ We + be); bf16 in, f32 accumulate on MXU.
    enc = jnp.dot(x, we_ref[...], preferred_element_type=jnp.float32) + be_ref[...]
    enc = jnp.maximum(enc, 0.0)                                         # f32 VPU

    # FFN layer 1 (dropout = identity in eval): Linear + ReLU.
    h = jnp.dot(enc.astype(jnp.bfloat16), w1_ref[...],
                preferred_element_type=jnp.float32) + b1_ref[...]
    h = jnp.maximum(h, 0.0)

    # FFN output layer: Linear.
    logits = jnp.dot(h.astype(jnp.bfloat16), w2_ref[...],
                     preferred_element_type=jnp.float32) + b2_ref[...]

    # classification and not training -> sigmoid (f32, EUP); lane-dense 128-wide store.
    out_ref[...] = jax.nn.sigmoid(logits)


def prepare_params(params):
    """Pad (lane-align N dims, match padded K dims) + bf16-cast parameters ONCE at init."""
    we, be, w1, b1, w2, b2 = params
    feat, hidden = we.shape
    ffn_hidden = w1.shape[1]
    out_size = w2.shape[1]

    hid_p = _round_up(hidden, LANE)
    ffn_p = _round_up(ffn_hidden, LANE)
    out_p = _round_up(out_size, LANE)           # lane-dense output

    def pad2(a, r, c):
        return jnp.pad(a, ((0, r - a.shape[0]), (0, c - a.shape[1])))

    prepared = (
        pad2(we, feat, hid_p).astype(jnp.bfloat16),   # K stays = feat (x is unpadded)
        pad2(be, 1, hid_p).astype(jnp.float32),
        pad2(w1, hid_p, ffn_p).astype(jnp.bfloat16),  # padded K rows hit zero enc columns -> exact
        pad2(b1, 1, ffn_p).astype(jnp.float32),
        pad2(w2, ffn_p, out_p).astype(jnp.bfloat16),
        pad2(b2, 1, out_p).astype(jnp.float32),
    )
    return prepared, out_size


def molecule_model_forward(x, prepared, out_size, *, max_tile_m=4096):
    """x: [batch, features] f32 (unpadded); prepared: output of prepare_params."""
    we_p, be_p, w1_p, b1_p, w2_p, b2_p = prepared
    batch, feat = x.shape
    out_p = w2_p.shape[1]

    # Generation-aware tiling: one big tile on single-TC chips, one tile per core on v7x.
    n_cores = _num_tensorcores()
    n_tiles = max(n_cores, pl.cdiv(batch, max_tile_m))
    if n_cores > 1:
        n_tiles = _round_up(n_tiles, n_cores)      # balanced load across both TCs
    tile_m = _round_up(pl.cdiv(batch, n_tiles), 8)
    batch_p = _round_up(batch, tile_m)
    if batch_p != batch:                           # row pad only when needed (no lane pad, no cast)
        x = jnp.pad(x, ((0, batch_p - batch), (0, 0)))

    grid = (batch_p // tile_m,)
    resident = lambda i: (0, 0)                    # same block every step -> stays VMEM-resident

    out_padded = pl.pallas_call(
        molecule_model_kernel,
        out_shape=jax.ShapeDtypeStruct((batch_p, out_p), jnp.float32),
        grid=grid,
        in_specs=[
            pl.BlockSpec((tile_m, feat), lambda i: (i, 0)),   # x: tiled over batch, full feat dim
            pl.BlockSpec(we_p.shape, resident),
            pl.BlockSpec(be_p.shape, resident),
            pl.BlockSpec(w1_p.shape, resident),
            pl.BlockSpec(b1_p.shape, resident),
            pl.BlockSpec(w2_p.shape, resident),
            pl.BlockSpec(b2_p.shape, resident),
        ],
        out_specs=pl.BlockSpec((tile_m, out_p), lambda i: (i, 0)),
        compiler_params=pltpu.CompilerParams(
            dimension_semantics=("parallel",),     # v7x: shard batch tiles over both TensorCores
            vmem_limit_bytes=16 * 1024 * 1024,     # actual need ~2 MiB; leave headroom on v7x
        ),
    )(x, we_p, be_p, w1_p, b1_p, w2_p, b2_p)

    return out_padded[:batch, :out_size]


def reference_forward(x, params):
    we, be, w1, b1, w2, b2 = params
    enc = jnp.maximum(x @ we + be, 0.0)
    h = jnp.maximum(enc @ w1 + b1, 0.0)
    logits = h @ w2 + b2
    return jax.nn.sigmoid(logits)


if __name__ == "__main__":
    # Shapes consistent with the module: molecule features -> hidden -> ffn_hidden -> output.
    batch = 512             # batched molecules per pallas_call (amortizes dispatch)
    features_size = 64      # pre-pooled molecule feature dim fed to the (simplified) encoder
    hidden_size = 32        # args.hidden_size  (first_linear_dim = hidden_size * 1)
    ffn_hidden_size = 32    # args.ffn_hidden_size
    output_size = 8         # args.output_size (num_tasks)

    key = jax.random.PRNGKey(0)
    kx, k0, k1, k2, k3, k4, k5 = jax.random.split(key, 7)

    x = jax.random.normal(kx, (batch, features_size), dtype=jnp.float32)

    # Deterministic synthetic parameters (not a checkpoint).
    w_enc = jax.random.normal(k0, (features_size, hidden_size), jnp.float32) * 0.1
    b_enc = jax.random.normal(k1, (1, hidden_size), jnp.float32) * 0.1
    w1 = jax.random.normal(k2, (hidden_size, ffn_hidden_size), jnp.float32) * 0.1
    b1 = jax.random.normal(k3, (1, ffn_hidden_size), jnp.float32) * 0.1
    w2 = jax.random.normal(k4, (ffn_hidden_size, output_size), jnp.float32) * 0.1
    b2 = jax.random.normal(k5, (1, output_size), jnp.float32) * 0.1

    params = (w_enc, b_enc, w1, b1, w2, b2)

    # One-time parameter prep (pad + bf16 cast) — not part of the per-call forward path.
    prepared, out_size = prepare_params(params)
    prepared = jax.block_until_ready(prepared)

    out = molecule_model_forward(x, prepared, out_size)
    out = jax.block_until_ready(out)

    ref = reference_forward(x, params)
    assert out.shape == (batch, output_size)
    # bf16 matmul inputs (f32 accumulation) -> loosened tolerance vs the f32 reference.
    assert jnp.allclose(out, ref, atol=1e-2, rtol=1e-2), "Pallas output mismatch vs reference"

    print("KERNEL_OK")
</pallas_src>

<mosaic_0001>
module attributes {stable_mosaic.version = 11 : i64} {
  func.func @molecule_model_kernel(%arg0: i32, %arg1: memref<512x64xf32, #tpu.memory_space<vmem>>, %arg2: memref<64x128xbf16, #tpu.memory_space<vmem>>, %arg3: memref<1x128xf32, #tpu.memory_space<vmem>>, %arg4: memref<128x128xbf16, #tpu.memory_space<vmem>>, %arg5: memref<1x128xf32, #tpu.memory_space<vmem>>, %arg6: memref<128x128xbf16, #tpu.memory_space<vmem>>, %arg7: memref<1x128xf32, #tpu.memory_space<vmem>>, %arg8: memref<512x128xf32, #tpu.memory_space<vmem>>) attributes {dimension_semantics = [#tpu.dimension_semantics<parallel>], iteration_bounds = array<i64: 1>, scalar_prefetch = 0 : i64, scratch_operands = 0 : i64, tpu.core_type = #tpu.core_type<tc>, window_params = [{transform_indices = @transform_0, window_bounds = array<i64: 512, 64>}, {pipeline_mode = #tpu.pipeline_mode<synchronous>, transform_indices = @transform_1, window_bounds = array<i64: 64, 128>}, {pipeline_mode = #tpu.pipeline_mode<synchronous>, transform_indices = @transform_2, window_bounds = array<i64: 1, 128>}, {pipeline_mode = #tpu.pipeline_mode<synchronous>, transform_indices = @transform_3, window_bounds = array<i64: 128, 128>}, {pipeline_mode = #tpu.pipeline_mode<synchronous>, transform_indices = @transform_4, window_bounds = array<i64: 1, 128>}, {pipeline_mode = #tpu.pipeline_mode<synchronous>, transform_indices = @transform_5, window_bounds = array<i64: 128, 128>}, {pipeline_mode = #tpu.pipeline_mode<synchronous>, transform_indices = @transform_6, window_bounds = array<i64: 1, 128>}, {transform_indices = @transform_7, window_bounds = array<i64: 512, 128>}]} {
    %c0 = arith.constant 0 : index
    %c0_0 = arith.constant 0 : index
    %0 = vector.load %arg1[%c0, %c0_0] : memref<512x64xf32, #tpu.memory_space<vmem>>, vector<512x64xf32>
    %1 = arith.truncf %0 : vector<512x64xf32> to vector<512x64xbf16>
    %c0_1 = arith.constant 0 : index
    %c0_2 = arith.constant 0 : index
    %2 = vector.load %arg2[%c0_1, %c0_2] : memref<64x128xbf16, #tpu.memory_space<vmem>>, vector<64x128xbf16>
    %cst = arith.constant dense<0.000000e+00> : vector<512x128xf32>
    %3 = tpu.matmul %1, %2, %cst {dimension_numbers = #tpu.dot_dimension_numbers<[1], [0], [0], [1], [0, 0, 1, 1], [], []>} : vector<512x64xbf16>, vector<64x128xbf16>, vector<512x128xf32> -> vector<512x128xf32>
    %c0_3 = arith.constant 0 : index
    %c0_4 = arith.constant 0 : index
    %4 = vector.load %arg3[%c0_3, %c0_4] : memref<1x128xf32, #tpu.memory_space<vmem>>, vector<1x128xf32>
    %5 = vector.broadcast %4 : vector<1x128xf32> to vector<512x128xf32>
    %6 = arith.addf %3, %5 : vector<512x128xf32>
    %cst_5 = arith.constant 0.000000e+00 : f32
    %7 = vector.broadcast %cst_5 : f32 to vector<512x128xf32>
    %8 = arith.maximumf %6, %7 : vector<512x128xf32>
    %9 = arith.truncf %8 : vector<512x128xf32> to vector<512x128xbf16>
    %c0_6 = arith.constant 0 : index
    %c0_7 = arith.constant 0 : index
    %10 = vector.load %arg4[%c0_6, %c0_7] : memref<128x128xbf16, #tpu.memory_space<vmem>>, vector<128x128xbf16>
    %cst_8 = arith.constant dense<0.000000e+00> : vector<512x128xf32>
    %11 = tpu.matmul %9, %10, %cst_8 {dimension_numbers = #tpu.dot_dimension_numbers<[1], [0], [0], [1], [0, 0, 1, 1], [], []>} : vector<512x128xbf16>, vector<128x128xbf16>, vector<512x128xf32> -> vector<512x128xf32>
    %c0_9 = arith.constant 0 : index
    %c0_10 = arith.constant 0 : index
    %12 = vector.load %arg5[%c0_9, %c0_10] : memref<1x128xf32, #tpu.memory_space<vmem>>, vector<1x128xf32>
    %13 = vector.broadcast %12 : vector<1x128xf32> to vector<512x128xf32>
    %14 = arith.addf %11, %13 : vector<512x128xf32>
    %cst_11 = arith.constant 0.000000e+00 : f32
    %15 = vector.broadcast %cst_11 : f32 to vector<512x128xf32>
    %16 = arith.maximumf %14, %15 : vector<512x128xf32>
    %17 = arith.truncf %16 : vector<512x128xf32> to vector<512x128xbf16>
    %c0_12 = arith.constant 0 : index
    %c0_13 = arith.constant 0 : index
    %18 = vector.load %arg6[%c0_12, %c0_13] : memref<128x128xbf16, #tpu.memory_space<vmem>>, vector<128x128xbf16>
    %cst_14 = arith.constant dense<0.000000e+00> : vector<512x128xf32>
    %19 = tpu.matmul %17, %18, %cst_14 {dimension_numbers = #tpu.dot_dimension_numbers<[1], [0], [0], [1], [0, 0, 1, 1], [], []>} : vector<512x128xbf16>, vector<128x128xbf16>, vector<512x128xf32> -> vector<512x128xf32>
    %c0_15 = arith.constant 0 : index
    %c0_16 = arith.constant 0 : index
    %20 = vector.load %arg7[%c0_15, %c0_16] : memref<1x128xf32, #tpu.memory_space<vmem>>, vector<1x128xf32>
    %21 = vector.broadcast %20 : vector<1x128xf32> to vector<512x128xf32>
    %22 = arith.addf %19, %21 : vector<512x128xf32>
    %23 = arith.negf %22 : vector<512x128xf32>
    %24 = math.exp %23 : vector<512x128xf32>
    %cst_17 = arith.constant 1.000000e+00 : f32
    %25 = vector.broadcast %cst_17 : f32 to vector<512x128xf32>
    %26 = arith.addf %25, %24 : vector<512x128xf32>
    %27 = arith.divf %25, %26 : vector<512x128xf32>
    %c0_18 = arith.constant 0 : index
    %c0_19 = arith.constant 0 : index
    %28 = vector.load %arg8[%c0_18, %c0_19] : memref<512x128xf32, #tpu.memory_space<vmem>>, vector<512x128xf32>
    tpu.vector_store %arg8[%c0_18, %c0_19], %27 {strides = array<i32>} : memref<512x128xf32, #tpu.memory_space<vmem>>, vector<512x128xf32>,
    return
  }
  func.func @transform_0(%arg0: i32) -> (i32, i32) {
    %c0_i32 = arith.constant 0 : i32
    %c0_i32_0 = arith.constant 0 : i32
    return %arg0, %c0_i32 : i32, i32
  }
  func.func @transform_1(%arg0: i32) -> (i32, i32) {
    %c0_i32 = arith.constant 0 : i32
    %c0_i32_0 = arith.constant 0 : i32
    %c0_i32_1 = arith.constant 0 : i32
    return %c0_i32, %c0_i32_0 : i32, i32
  }
  func.func @transform_2(%arg0: i32) -> (i32, i32) {
    %c0_i32 = arith.constant 0 : i32
    %c0_i32_0 = arith.constant 0 : i32
    %c0_i32_1 = arith.constant 0 : i32
    return %c0_i32, %c0_i32_0 : i32, i32
  }
  func.func @transform_3(%arg0: i32) -> (i32, i32) {
    %c0_i32 = arith.constant 0 : i32
    %c0_i32_0 = arith.constant 0 : i32
    %c0_i32_1 = arith.constant 0 : i32
    return %c0_i32, %c0_i32_0 : i32, i32
  }
  func.func @transform_4(%arg0: i32) -> (i32, i32) {
    %c0_i32 = arith.constant 0 : i32
    %c0_i32_0 = arith.constant 0 : i32
    %c0_i32_1 = arith.constant 0 : i32
    return %c0_i32, %c0_i32_0 : i32, i32
  }
  func.func @transform_5(%arg0: i32) -> (i32, i32) {
    %c0_i32 = arith.constant 0 : i32
    %c0_i32_0 = arith.constant 0 : i32
    %c0_i32_1 = arith.constant 0 : i32
    return %c0_i32, %c0_i32_0 : i32, i32
  }
  func.func @transform_6(%arg0: i32) -> (i32, i32) {
    %c0_i32 = arith.constant 0 : i32
    %c0_i32_0 = arith.constant 0 : i32
    %c0_i32_1 = arith.constant 0 : i32
    return %c0_i32, %c0_i32_0 : i32, i32
  }
  func.func @transform_7(%arg0: i32) -> (i32, i32) {
    %c0_i32 = arith.constant 0 : i32
    %c0_i32_0 = arith.constant 0 : i32
    return %arg0, %c0_i32 : i32, i32
  }
}

</mosaic_0001>

<llo_original>
// kernel: tpu_custom_call.1
$region0: #{tpu_custom_call.1}
  #allocation0 [shape = 'u32[]', space=smem, size = 0x4, offset = 0x4, fixed_abs, tag = 'smem constant byte address 0x4 - core index']
  #allocation1 [shape = 'u32[144,128]{1,0:T(1,128)}', space=vmem, size = 0x12000, scoped, tag = 'internal scratch']
  %s0 = inlined_call_operand.vmem [shape: f32[512,64], index: 0, kind: input, shape index: {}]
  %s1 = inlined_call_operand.vmem [shape: bf16[64,128], index: 1, kind: input, shape index: {}]
  %s2 = inlined_call_operand.vmem [shape: f32[1,128], index: 2, kind: input, shape index: {}]
  %s3 = inlined_call_operand.vmem [shape: bf16[128,128], index: 3, kind: input, shape index: {}]
  %s4 = inlined_call_operand.vmem [shape: f32[1,128], index: 4, kind: input, shape index: {}]
  %s5 = inlined_call_operand.vmem [shape: bf16[128,128], index: 5, kind: input, shape index: {}]
  %s6 = inlined_call_operand.vmem [shape: f32[1,128], index: 6, kind: input, shape index: {}]
  %s7 = inlined_call_operand.hbm [shape: f32[512,128], index: 7, kind: output, shape index: {}]
  %s8 = sld [smem:[#allocation0]]
  $region38: #{tpu_custom_call.1} parent=0
    _
  %s10 = ssub.s32 1, %s8
  %s11 = scalar_select 0, %s10, %s8
  $region1: #{tpu_custom_call.1} parent=0
    #allocation2 [shape = 'u8[262144]{0}', space=vmem, size = 0x40000, scoped, tag = 'output window, operand 0, single buffered']
    #allocation3 [shape = 's32[1]{0}', space=sflag, size = 0x4, scoped, tag = 'scoped memory for tpu_custom_call.1']
    %12 = vsyncpa [#allocation3], 0
    // Predicated region
    $region2: #{tpu_custom_call.1} parent=1 // pred_check
      _
    $region3: #{tpu_custom_call.1} parent=1 // pred_check_branch
      %14 = sbr.rel (0) target = $region5
    $region4: #{tpu_custom_call.1} parent=1 // pred_region
      _
    $region5: #{tpu_custom_call.1} parent=1 // pred_fallthru
      _
    // Predicated region
    $region6: #{tpu_custom_call.1} parent=1 // pred_check
      _
    $region7: #{tpu_custom_call.1} parent=1 // pred_check_branch
      %16 = sbr.rel (0) target = $region9
    $region8: #{tpu_custom_call.1} parent=1 // pred_region
      _
    $region9: #{tpu_custom_call.1} parent=1 // pred_fallthru
      _
    // Predicated region
    $region10: #{tpu_custom_call.1} parent=1 // pred_check
      _
    $region11: #{tpu_custom_call.1} parent=1 // pred_check_branch
      %18 = sbr.rel (0) target = $region13
    $region12: #{tpu_custom_call.1} parent=1 // pred_region
      _
    $region13: #{tpu_custom_call.1} parent=1 // pred_fallthru
      _
    // Predicated region
    $region14: #{tpu_custom_call.1} parent=1 // pred_check
      _
    $region15: #{tpu_custom_call.1} parent=1 // pred_check_branch
      %20 = sbr.rel (0) target = $region17
    $region16: #{tpu_custom_call.1} parent=1 // pred_region
      _
    $region17: #{tpu_custom_call.1} parent=1 // pred_fallthru
      _
    // Predicated region
    $region18: #{tpu_custom_call.1} parent=1 // pred_check
      _
    $region19: #{tpu_custom_call.1} parent=1 // pred_check_branch
      %22 = sbr.rel (0) target = $region21
    $region20: #{tpu_custom_call.1} parent=1 // pred_region
      _
    $region21: #{tpu_custom_call.1} parent=1 // pred_fallthru
      _
    // Predicated region
    $region22: #{tpu_custom_call.1} parent=1 // pred_check
      _
    $region23: #{tpu_custom_call.1} parent=1 // pred_check_branch
      %24 = sbr.rel (0) target = $region25
    $region24: #{tpu_custom_call.1} parent=1 // pred_region
      _
    $region25: #{tpu_custom_call.1} parent=1 // pred_fallthru
      _
    // Predicated region
    $region26: #{tpu_custom_call.1} parent=1 // pred_check
      _
    $region27: #{tpu_custom_call.1} parent=1 // pred_check_branch
      %26 = sbr.rel (0) target = $region29
    $region28: #{tpu_custom_call.1} parent=1 // pred_region
      _
    $region29: #{tpu_custom_call.1} parent=1 // pred_fallthru
      _
    %v28 = vld [vmem:[%s0] sm:$0xff]
    %v29 = vld [vmem:[%s0 + $0x8] sm:$0xff]
    %v30 = vld [vmem:[%s0 + $0x10] sm:$0xff]
    %v31 = vld [vmem:[%s0 + $0x18] sm:$0xff]
    %v32 = vld [vmem:[%s0 + $0x20] sm:$0xff]
    %v33 = vld [vmem:[%s0 + $0x28] sm:$0xff]
    %v34 = vld [vmem:[%s0 + $0x30] sm:$0xff]
    %v35 = vld [vmem:[%s0 + $0x38] sm:$0xff]
    %v36 = vld [vmem:[%s0 + $0x40] sm:$0xff]
    %v37 = vld [vmem:[%s0 + $0x48] sm:$0xff]
    %v38 = vld [vmem:[%s0 + $0x50] sm:$0xff]
    %v39 = vld [vmem:[%s0 + $0x58] sm:$0xff]
    %v40 = vld [vmem:[%s0 + $0x60] sm:$0xff]
    %v41 = vld [vmem:[%s0 + $0x68] sm:$0xff]
    %v42 = vld [vmem:[%s0 + $0x70] sm:$0xff]
    %v43 = vld [vmem:[%s0 + $0x78] sm:$0xff]
    %v44 = vld [vmem:[%s0 + $0x80] sm:$0xff]
    %v45 = vld [vmem:[%s0 + $0x88] sm:$0xff]
    %v46 = vld [vmem:[%s0 + $0x90] sm:$0xff]
    %v47 = vld [vmem:[%s0 + $0x98] sm:$0xff]
    %v48 = vld [vmem:[%s0 + $0xa0] sm:$0xff]
    %v49 = vld [vmem:[%s0 + $0xa8] sm:$0xff]
    %v50 = vld [vmem:[%s0 + $0xb0] sm:$0xff]
    %v51 = vld [vmem:[%s0 + $0xb8] sm:$0xff]
    %v52 = vld [vmem:[%s0 + $0xc0] sm:$0xff]
    %v53 = vld [vmem:[%s0 + $0xc8] sm:$0xff]
    %v54 = vld [vmem:[%s0 + $0xd0] sm:$0xff]
    %v55 = vld [vmem:[%s0 + $0xd8] sm:$0xff]
    %v56 = vld [vmem:[%s0 + $0xe0] sm:$0xff]
    %v57 = vld [vmem:[%s0 + $0xe8] sm:$0xff]
    %v58 = vld [vmem:[%s0 + $0xf0] sm:$0xff]
    %v59 = vld [vmem:[%s0 + $0xf8] sm:$0xff]
    %v60 = vld [vmem:[%s0 + $0x100] sm:$0xff]
    %v61 = vld [vmem:[%s0 + $0x108] sm:$0xff]
    %v62 = vld [vmem:[%s0 + $0x110] sm:$0xff]
    %v63 = vld [vmem:[%s0 + $0x118] sm:$0xff]
    %v64 = vld [vmem:[%s0 + $0x120] sm:$0xff]
    %v65 = vld [vmem:[%s0 + $0x128] sm:$0xff]
    %v66 = vld [vmem:[%s0 + $0x130] sm:$0xff]
    %v67 = vld [vmem:[%s0 + $0x138] sm:$0xff]
    %v68 = vld [vmem:[%s0 + $0x140] sm:$0xff]
    %v69 = vld [vmem:[%s0 + $0x148] sm:$0xff]
    %v70 = vld [vmem:[%s0 + $0x150] sm:$0xff]
    %v71 = vld [vmem:[%s0 + $0x158] sm:$0xff]
    %v72 = vld [vmem:[%s0 + $0x160] sm:$0xff]
    %v73 = vld [vmem:[%s0 + $0x168] sm:$0xff]
    %v74 = vld [vmem:[%s0 + $0x170] sm:$0xff]
    %v75 = vld [vmem:[%s0 + $0x178] sm:$0xff]
    %v76 = vld [vmem:[%s0 + $0x180] sm:$0xff]
    %v77 = vld [vmem:[%s0 + $0x188] sm:$0xff]
    %v78 = vld [vmem:[%s0 + $0x190] sm:$0xff]
    %v79 = vld [vmem:[%s0 + $0x198] sm:$0xff]
    %v80 = vld [vmem:[%s0 + $0x1a0] sm:$0xff]
    %v81 = vld [vmem:[%s0 + $0x1a8] sm:$0xff]
    %v82 = vld [vmem:[%s0 + $0x1b0] sm:$0xff]
    %v83 = vld [vmem:[%s0 + $0x1b8] sm:$0xff]
    %v84 = vld [vmem:[%s0 + $0x1c0] sm:$0xff]
    %v85 = vld [vmem:[%s0 + $0x1c8] sm:$0xff]
    %v86 = vld [vmem:[%s0 + $0x1d0] sm:$0xff]
    %v87 = vld [vmem:[%s0 + $0x1d8] sm:$0xff]
    %v88 = vld [vmem:[%s0 + $0x1e0] sm:$0xff]
    %v89 = vld [vmem:[%s0 + $0x1e8] sm:$0xff]
    %v90 = vld [vmem:[%s0 + $0x1f0] sm:$0xff]
    %v91 = vld [vmem:[%s0 + $0x1f8] sm:$0xff]
    %v92 = vpack.c.bf16 %v29, %v28
    %v93 = vpack.c.bf16 %v31, %v30
    %v94 = vpack.c.bf16 %v33, %v32
    %v95 = vpack.c.bf16 %v35, %v34
    %v96 = vpack.c.bf16 %v37, %v36
    %v97 = vpack.c.bf16 %v39, %v38
    %v98 = vpack.c.bf16 %v41, %v40
    %v99 = vpack.c.bf16 %v43, %v42
    %v100 = vpack.c.bf16 %v45, %v44
    %v101 = vpack.c.bf16 %v47, %v46
    %v102 = vpack.c.bf16 %v49, %v48
    %v103 = vpack.c.bf16 %v51, %v50
    %v104 = vpack.c.bf16 %v53, %v52
    %v105 = vpack.c.bf16 %v55, %v54
    %v106 = vpack.c.bf16 %v57, %v56
    %v107 = vpack.c.bf16 %v59, %v58
    %v108 = vpack.c.bf16 %v61, %v60
    %v109 = vpack.c.bf16 %v63, %v62
    %v110 = vpack.c.bf16 %v65, %v64
    %v111 = vpack.c.bf16 %v67, %v66
    %v112 = vpack.c.bf16 %v69, %v68
    %v113 = vpack.c.bf16 %v71, %v70
    %v114 = vpack.c.bf16 %v73, %v72
    %v115 = vpack.c.bf16 %v75, %v74
    %v116 = vpack.c.bf16 %v77, %v76
    %v117 = vpack.c.bf16 %v79, %v78
    %v118 = vpack.c.bf16 %v81, %v80
    %v119 = vpack.c.bf16 %v83, %v82
    %v120 = vpack.c.bf16 %v85, %v84
    %v121 = vpack.c.bf16 %v87, %v86
    %v122 = vpack.c.bf16 %v89, %v88
    %v123 = vpack.c.bf16 %v91, %v90
    %v124 = vld [vmem:[%s1] sm:$0xf]
    %v125 = vld [vmem:[%s1 + $0x4] sm:$0xf]
    %v126 = vld [vmem:[%s1 + $0x8] sm:$0xf]
    %v127 = vld [vmem:[%s1 + $0xc] sm:$0xf]
    %v128 = vld [vmem:[%s1 + $0x10] sm:$0xf]
    %v129 = vld [vmem:[%s1 + $0x14] sm:$0xf]
    %v130 = vld [vmem:[%s1 + $0x18] sm:$0xf]
    %v131 = vld [vmem:[%s1 + $0x1c] sm:$0xf]
    %v132 = vld [vmem:[%s2] sm:$0x1]
    %v134 = vlaneseq
    %v135 = vshrl.u32 %v134, 7
    %v136 = vsub.s32 0, %v135
    %v137 = vrot.slane %v132, %v136
    %v147 = vunpack.c.l.b16 %v124
    %v148 = vunpack.c.l.b16 %v125
    %v149 = vunpack.c.l.b16 %v126
    %v150 = vunpack.c.l.b16 %v127
    %v151 = vunpack.c.l.b16 %v128
    %v152 = vunpack.c.l.b16 %v129
    %v153 = vunpack.c.l.b16 %v130
    %v154 = vunpack.c.l.b16 %v131
    %v155 = vpack.c.b16 %v148, %v147
    %v156 = vpack.c.b16 %v150, %v149
    %v157 = vpack.c.b16 %v152, %v151
    %v158 = vpack.c.b16 %v154, %v153
    %vm163 = vcmask 523264
    %v165 = vsel %vm163, %v92, 0
    %v168 = vsel %vm163, %v93, 0
    %v171 = vsel %vm163, %v94, 0
    %v174 = vsel %vm163, %v95, 0
    %v177 = vsel %vm163, %v96, 0
    %v180 = vsel %vm163, %v97, 0
    %v183 = vsel %vm163, %v98, 0
    %v186 = vsel %vm163, %v99, 0
    %v189 = vsel %vm163, %v100, 0
    %v192 = vsel %vm163, %v101, 0
    %v195 = vsel %vm163, %v102, 0
    %v198 = vsel %vm163, %v103, 0
    %v201 = vsel %vm163, %v104, 0
    %v204 = vsel %vm163, %v105, 0
    %v207 = vsel %vm163, %v106, 0
    %v210 = vsel %vm163, %v107, 0
    %v213 = vsel %vm163, %v108, 0
    %v216 = vsel %vm163, %v109, 0
    %v219 = vsel %vm163, %v110, 0
    %v222 = vsel %vm163, %v111, 0
    %v225 = vsel %vm163, %v112, 0
    %v228 = vsel %vm163, %v113, 0
    %v231 = vsel %vm163, %v114, 0
    %v234 = vsel %vm163, %v115, 0
    %v237 = vsel %vm163, %v116, 0
    %v240 = vsel %vm163, %v117, 0
    %v243 = vsel %vm163, %v118, 0
    %v246 = vsel %vm163, %v119, 0
    %v249 = vsel %vm163, %v120, 0
    %v252 = vsel %vm163, %v121, 0
    %v255 = vsel %vm163, %v122, 0
    %v258 = vsel %vm163, %v123, 0
    %260 = vmatprep.subr.bf16.mxu0 0
    %261 = vmatpush1.bf16.msra.mxu0 0
    %262 = vmatprep.subr.bf16.mxu0 0
    %263 = vmatpush1.bf16.msra.mxu0 0
    %264 = vmatprep.subr.bf16.mxu0 0
    %265 = vmatpush1.bf16.msra.mxu0 0
    %266 = vmatprep.subr.bf16.mxu0 0
    %267 = vmatpush1.bf16.msra.mxu0 0
    %268 = vmatprep.subr.bf16.mxu0 0
    %269 = vmatpush1.bf16.msra.mxu0 %v158
    %270 = vmatprep.subr.bf16.mxu0 0
    %271 = vmatpush1.bf16.msra.mxu0 %v157
    %272 = vmatprep.subr.bf16.mxu0 0
    %273 = vmatpush1.bf16.msra.mxu0 %v156
    %274 = vmatprep.subr.bf16.mxu0 0
    %275 = vmatpush1.bf16.msra.mxu0 %v155
    %276 = vmatprep.subr.bf16.mxu0 0
    %277 = vmatpush2.bf16.msra.mxu0 0
    %278 = vmatprep.subr.bf16.mxu0 0
    %279 = vmatpush2.bf16.msra.mxu0 0
    %280 = vmatprep.subr.bf16.mxu0 0
    %281 = vmatpush2.bf16.msra.mxu0 0
    %282 = vmatprep.subr.bf16.mxu0 0
    %283 = vmatpush2.bf16.msra.mxu0 0
    %284 = vmatprep.subr.bf16.mxu0 0
    %285 = vmatpush2.bf16.msra.mxu0 0
    %286 = vmatprep.subr.bf16.mxu0 0
    %287 = vmatpush2.bf16.msra.mxu0 0
    %288 = vmatprep.subr.bf16.mxu0 0
    %289 = vmatpush2.bf16.msra.mxu0 0
    %290 = vmatprep.subr.bf16.mxu0 0
    %291 = vmatpush2.bf16.msra.mxu0 0
    %292 = vmatprep.mubr.bf16.mxu0 0
    %293 = vmatmul.mubr.bf16.gmra.mxu0 %v165
    %v294 = vpop.f32.mrf.mxu0
    %v295 = vadd.f32 %v137, %v294
    %v296 = vpop.f32.mrf.mxu0
    %v297 = vpop.f32.mrf.mxu0
    %v298 = vadd.f32 %v137, %v297
    %v299 = vpop.f32.mrf.mxu0
    %300 = vmatprep.mubr.bf16.mxu0 0
    %301 = vmatmul.mubr.bf16.gmra.mxu0 %v168
    %v302 = vpop.f32.mrf.mxu0
    %v303 = vadd.f32 %v137, %v302
    %v304 = vpop.f32.mrf.mxu0
    %v305 = vpop.f32.mrf.mxu0
    %v306 = vadd.f32 %v137, %v305
    %v307 = vpop.f32.mrf.mxu0
    %308 = vmatprep.mubr.bf16.mxu0 0
    %309 = vmatmul.mubr.bf16.gmra.mxu0 %v171
    %v310 = vpop.f32.mrf.mxu0
    %v311 = vadd.f32 %v137, %v310
    %v312 = vpop.f32.mrf.mxu0
    %v313 = vpop.f32.mrf.mxu0
    %v314 = vadd.f32 %v137, %v313
    %v315 = vpop.f32.mrf.mxu0
    %316 = vmatprep.mubr.bf16.mxu0 0
    %317 = vmatmul.mubr.bf16.gmra.mxu0 %v174
    %v318 = vpop.f32.mrf.mxu0
    %v319 = vadd.f32 %v137, %v318
    %v320 = vpop.f32.mrf.mxu0
    %v321 = vpop.f32.mrf.mxu0
    %v322 = vadd.f32 %v137, %v321
    %v323 = vpop.f32.mrf.mxu0
    %324 = vmatprep.mubr.bf16.mxu0 0
    %325 = vmatmul.mubr.bf16.gmra.mxu0 %v177
    %v326 = vpop.f32.mrf.mxu0
    %v327 = vadd.f32 %v137, %v326
    %v328 = vpop.f32.mrf.mxu0
    %v329 = vpop.f32.mrf.mxu0
    %v330 = vadd.f32 %v137, %v329
    %v331 = vpop.f32.mrf.mxu0
    %332 = vmatprep.mubr.bf16.mxu0 0
    %333 = vmatmul.mubr.bf16.gmra.mxu0 %v180
    %v334 = vpop.f32.mrf.mxu0
    %v335 = vadd.f32 %v137, %v334
    %v336 = vpop.f32.mrf.mxu0
    %v337 = vpop.f32.mrf.mxu0
    %v338 = vadd.f32 %v137, %v337
    %v339 = vpop.f32.mrf.mxu0
    %340 = vmatprep.mubr.bf16.mxu0 0
    %341 = vmatmul.mubr.bf16.gmra.mxu0 %v183
    %v342 = vpop.f32.mrf.mxu0
    %v343 = vadd.f32 %v137, %v342
    %v344 = vpop.f32.mrf.mxu0
    %v345 = vpop.f32.mrf.mxu0
    %v346 = vadd.f32 %v137, %v345
    %v347 = vpop.f32.mrf.mxu0
    %348 = vmatprep.mubr.bf16.mxu0 0
    %349 = vmatmul.mubr.bf16.gmra.mxu0 %v186
    %v350 = vpop.f32.mrf.mxu0
    %v351 = vadd.f32 %v137, %v350
    %v352 = vpop.f32.mrf.mxu0
    %v353 = vpop.f32.mrf.mxu0
    %v354 = vadd.f32 %v137, %v353
    %v355 = vpop.f32.mrf.mxu0
    %356 = vmatprep.mubr.bf16.mxu0 0
    %357 = vmatmul.mubr.bf16.gmra.mxu0 %v189
    %v358 = vpop.f32.mrf.mxu0
    %v359 = vadd.f32 %v137, %v358
    %v360 = vpop.f32.mrf.mxu0
    %v361 = vpop.f32.mrf.mxu0
    %v362 = vadd.f32 %v137, %v361
    %v363 = vpop.f32.mrf.mxu0
    %364 = vmatprep.mubr.bf16.mxu0 0
    %365 = vmatmul.mubr.bf16.gmra.mxu0 %v192
    %v366 = vpop.f32.mrf.mxu0
    %v367 = vadd.f32 %v137, %v366
    %v368 = vpop.f32.mrf.mxu0
    %v369 = vpop.f32.mrf.mxu0
    %v370 = vadd.f32 %v137, %v369
    %v371 = vpop.f32.mrf.mxu0
    %372 = vmatprep.mubr.bf16.mxu0 0
    %373 = vmatmul.mubr.bf16.gmra.mxu0 %v195
    %v374 = vpop.f32.mrf.mxu0
    %v375 = vadd.f32 %v137, %v374
    %v376 = vpop.f32.mrf.mxu0
    %v377 = vpop.f32.mrf.mxu0
    %v378 = vadd.f32 %v137, %v377
    %v379 = vpop.f32.mrf.mxu0
    %380 = vmatprep.mubr.bf16.mxu0 0
    %381 = vmatmul.mubr.bf16.gmra.mxu0 %v198
    %v382 = vpop.f32.mrf.mxu0
    %v383 = vadd.f32 %v137, %v382
    %v384 = vpop.f32.mrf.mxu0
    %v385 = vpop.f32.mrf.mxu0
    %v386 = vadd.f32 %v137, %v385
    %v387 = vpop.f32.mrf.mxu0
    %388 = vmatprep.mubr.bf16.mxu0 0
    %389 = vmatmul.mubr.bf16.gmra.mxu0 %v201
    %v390 = vpop.f32.mrf.mxu0
    %v391 = vadd.f32 %v137, %v390
    %v392 = vpop.f32.mrf.mxu0
    %v393 = vpop.f32.mrf.mxu0
    %v394 = vadd.f32 %v137, %v393
    %v395 = vpop.f32.mrf.mxu0
    %396 = vmatprep.mubr.bf16.mxu0 0
    %397 = vmatmul.mubr.bf16.gmra.mxu0 %v204
    %v398 = vpop.f32.mrf.mxu0
    %v399 = vadd.f32 %v137, %v398
    %v400 = vpop.f32.mrf.mxu0
    %v401 = vpop.f32.mrf.mxu0
    %v402 = vadd.f32 %v137, %v401
    %v403 = vpop.f32.mrf.mxu0
    %404 = vmatprep.mubr.bf16.mxu0 0
    %405 = vmatmul.mubr.bf16.gmra.mxu0 %v207
    %v406 = vpop.f32.mrf.mxu0
    %v407 = vadd.f32 %v137, %v406
    %v408 = vpop.f32.mrf.mxu0
    %v409 = vpop.f32.mrf.mxu0
    %v410 = vadd.f32 %v137, %v409
    %v411 = vpop.f32.mrf.mxu0
    %412 = vmatprep.mubr.bf16.mxu0 0
    %413 = vmatmul.mubr.bf16.gmra.mxu0 %v210
    %v414 = vpop.f32.mrf.mxu0
    %v415 = vadd.f32 %v137, %v414
    %v416 = vpop.f32.mrf.mxu0
    %v417 = vpop.f32.mrf.mxu0
    %v418 = vadd.f32 %v137, %v417
    %v419 = vpop.f32.mrf.mxu0
    %420 = vmatprep.mubr.bf16.mxu0 0
    %421 = vmatmul.mubr.bf16.gmra.mxu0 %v213
    %v422 = vpop.f32.mrf.mxu0
    %v423 = vadd.f32 %v137, %v422
    %v424 = vpop.f32.mrf.mxu0
    %v425 = vpop.f32.mrf.mxu0
    %v426 = vadd.f32 %v137, %v425
    %v427 = vpop.f32.mrf.mxu0
    %428 = vmatprep.mubr.bf16.mxu0 0
    %429 = vmatmul.mubr.bf16.gmra.mxu0 %v216
    %v430 = vpop.f32.mrf.mxu0
    %v431 = vadd.f32 %v137, %v430
    %v432 = vpop.f32.mrf.mxu0
    %v433 = vpop.f32.mrf.mxu0
    %v434 = vadd.f32 %v137, %v433
    %v435 = vpop.f32.mrf.mxu0
    %436 = vmatprep.mubr.bf16.mxu0 0
    %437 = vmatmul.mubr.bf16.gmra.mxu0 %v219
    %v438 = vpop.f32.mrf.mxu0
    %v439 = vadd.f32 %v137, %v438
    %v440 = vpop.f32.mrf.mxu0
    %v441 = vpop.f32.mrf.mxu0
    %v442 = vadd.f32 %v137, %v441
    %v443 = vpop.f32.mrf.mxu0
    %444 = vmatprep.mubr.bf16.mxu0 0
    %445 = vmatmul.mubr.bf16.gmra.mxu0 %v222
    %v446 = vpop.f32.mrf.mxu0
    %v447 = vadd.f32 %v137, %v446
    %v448 = vpop.f32.mrf.mxu0
    %v449 = vpop.f32.mrf.mxu0
    %v450 = vadd.f32 %v137, %v449
    %v451 = vpop.f32.mrf.mxu0
    %452 = vmatprep.mubr.bf16.mxu0 0
    %453 = vmatmul.mubr.bf16.gmra.mxu0 %v225
    %v454 = vpop.f32.mrf.mxu0
    %v455 = vadd.f32 %v137, %v454
    %v456 = vpop.f32.mrf.mxu0
    %v457 = vpop.f32.mrf.mxu0
    %v458 = vadd.f32 %v137, %v457
    %v459 = vpop.f32.mrf.mxu0
    %460 = vmatprep.mubr.bf16.mxu0 0
    %461 = vmatmul.mubr.bf16.gmra.mxu0 %v228
    %v462 = vpop.f32.mrf.mxu0
    %v463 = vadd.f32 %v137, %v462
    %v464 = vpop.f32.mrf.mxu0
    %v465 = vpop.f32.mrf.mxu0
    %v466 = vadd.f32 %v137, %v465
    %v467 = vpop.f32.mrf.mxu0
    %468 = vmatprep.mubr.bf16.mxu0 0
    %469 = vmatmul.mubr.bf16.gmra.mxu0 %v231
    %v470 = vpop.f32.mrf.mxu0
    %v471 = vadd.f32 %v137, %v470
    %v472 = vpop.f32.mrf.mxu0
    %v473 = vpop.f32.mrf.mxu0
    %v474 = vadd.f32 %v137, %v473
    %v475 = vpop.f32.mrf.mxu0
    %476 = vmatprep.mubr.bf16.mxu0 0
    %477 = vmatmul.mubr.bf16.gmra.mxu0 %v234
    %v478 = vpop.f32.mrf.mxu0
    %v479 = vadd.f32 %v137, %v478
    %v480 = vpop.f32.mrf.mxu0
    %v481 = vpop.f32.mrf.mxu0
    %v482 = vadd.f32 %v137, %v481
    %v483 = vpop.f32.mrf.mxu0
    %484 = vmatprep.mubr.bf16.mxu0 0
    %485 = vmatmul.mubr.bf16.gmra.mxu0 %v237
    %v486 = vpop.f32.mrf.mxu0
    %v487 = vadd.f32 %v137, %v486
    %v488 = vpop.f32.mrf.mxu0
    %v489 = vpop.f32.mrf.mxu0
    %v490 = vadd.f32 %v137, %v489
    %v491 = vpop.f32.mrf.mxu0
    %492 = vmatprep.mubr.bf16.mxu0 0
    %493 = vmatmul.mubr.bf16.gmra.mxu0 %v240
    %v494 = vpop.f32.mrf.mxu0
    %v495 = vadd.f32 %v137, %v494
    %v496 = vpop.f32.mrf.mxu0
    %v497 = vpop.f32.mrf.mxu0
    %v498 = vadd.f32 %v137, %v497
    %v499 = vpop.f32.mrf.mxu0
    %500 = vmatprep.mubr.bf16.mxu0 0
    %501 = vmatmul.mubr.bf16.gmra.mxu0 %v243
    %v502 = vpop.f32.mrf.mxu0
    %v503 = vadd.f32 %v137, %v502
    %v504 = vpop.f32.mrf.mxu0
    %v505 = vpop.f32.mrf.mxu0
    %v506 = vadd.f32 %v137, %v505
    %v507 = vpop.f32.mrf.mxu0
    %508 = vmatprep.mubr.bf16.mxu0 0
    %509 = vmatmul.mubr.bf16.gmra.mxu0 %v246
    %v510 = vpop.f32.mrf.mxu0
    %v511 = vadd.f32 %v137, %v510
    %v512 = vpop.f32.mrf.mxu0
    %v513 = vpop.f32.mrf.mxu0
    %v514 = vadd.f32 %v137, %v513
    %v515 = vpop.f32.mrf.mxu0
    %516 = vmatprep.mubr.bf16.mxu0 0
    %517 = vmatmul.mubr.bf16.gmra.mxu0 %v249
    %v518 = vpop.f32.mrf.mxu0
    %v519 = vadd.f32 %v137, %v518
    %v520 = vpop.f32.mrf.mxu0
    %v521 = vpop.f32.mrf.mxu0
    %v522 = vadd.f32 %v137, %v521
    %v523 = vpop.f32.mrf.mxu0
    %524 = vmatprep.mubr.bf16.mxu0 0
    %525 = vmatmul.mubr.bf16.gmra.mxu0 %v252
    %v526 = vpop.f32.mrf.mxu0
    %v527 = vadd.f32 %v137, %v526
    %v528 = vpop.f32.mrf.mxu0
    %v529 = vpop.f32.mrf.mxu0
    %v530 = vadd.f32 %v137, %v529
    %v531 = vpop.f32.mrf.mxu0
    %532 = vmatprep.mubr.bf16.mxu0 0
    %533 = vmatmul.mubr.bf16.gmra.mxu0 %v255
    %v534 = vpop.f32.mrf.mxu0
    %v535 = vadd.f32 %v137, %v534
    %v536 = vpop.f32.mrf.mxu0
    %v537 = vpop.f32.mrf.mxu0
    %v538 = vadd.f32 %v137, %v537
    %v539 = vpop.f32.mrf.mxu0
    %540 = vmatprep.mubr.bf16.mxu0 0
    %541 = vmatmul.mubr.bf16.gmra.mxu0 %v258
    %v542 = vpop.f32.mrf.mxu0
    %v543 = vadd.f32 %v137, %v542
    %v544 = vpop.f32.mrf.mxu0
    %v545 = vpop.f32.mrf.mxu0
    %v546 = vadd.f32 %v137, %v545
    %v547 = vpop.f32.mrf.mxu0
    %548 = vdwg.mxu0
    %v549 = vmax.f32 %v295, 0.0
    %v550 = vmax.f32 %v298, 0.0
    %v551 = vmax.f32 %v303, 0.0
    %v552 = vmax.f32 %v306, 0.0
    %v553 = vmax.f32 %v311, 0.0
    %v554 = vmax.f32 %v314, 0.0
    %v555 = vmax.f32 %v319, 0.0
    %v556 = vmax.f32 %v322, 0.0
    %v557 = vmax.f32 %v327, 0.0
    %v558 = vmax.f32 %v330, 0.0
    %v559 = vmax.f32 %v335, 0.0
    %v560 = vmax.f32 %v338, 0.0
    %v561 = vmax.f32 %v343, 0.0
    %v562 = vmax.f32 %v346, 0.0
    %v563 = vmax.f32 %v351, 0.0
    %v564 = vmax.f32 %v354, 0.0
    %v565 = vmax.f32 %v359, 0.0
    %v566 = vmax.f32 %v362, 0.0
    %v567 = vmax.f32 %v367, 0.0
    %v568 = vmax.f32 %v370, 0.0
    %v569 = vmax.f32 %v375, 0.0
    %v570 = vmax.f32 %v378, 0.0
    %v571 = vmax.f32 %v383, 0.0
    %v572 = vmax.f32 %v386, 0.0
    %v573 = vmax.f32 %v391, 0.0
    %v574 = vmax.f32 %v394, 0.0
    %v575 = vmax.f32 %v399, 0.0
    %v576 = vmax.f32 %v402, 0.0
    %v577 = vmax.f32 %v407, 0.0
    %v578 = vmax.f32 %v410, 0.0
    %v579 = vmax.f32 %v415, 0.0
    %v580 = vmax.f32 %v418, 0.0
    %v581 = vmax.f32 %v423, 0.0
    %v582 = vmax.f32 %v426, 0.0
    %v583 = vmax.f32 %v431, 0.0
    %v584 = vmax.f32 %v434, 0.0
    %v585 = vmax.f32 %v439, 0.0
    %v586 = vmax.f32 %v442, 0.0
    %v587 = vmax.f32 %v447, 0.0
    %v588 = vmax.f32 %v450, 0.0
    %v589 = vmax.f32 %v455, 0.0
    %v590 = vmax.f32 %v458, 0.0
    %v591 = vmax.f32 %v463, 0.0
    %v592 = vmax.f32 %v466, 0.0
    %v593 = vmax.f32 %v471, 0.0
    %v594 = vmax.f32 %v474, 0.0
    %v595 = vmax.f32 %v479, 0.0
    %v596 = vmax.f32 %v482, 0.0
    %v597 = vmax.f32 %v487, 0.0
    %v598 = vmax.f32 %v490, 0.0
    %v599 = vmax.f32 %v495, 0.0
    %v600 = vmax.f32 %v498, 0.0
    %v601 = vmax.f32 %v503, 0.0
    %v602 = vmax.f32 %v506, 0.0
    %v603 = vmax.f32 %v511, 0.0
    %v604 = vmax.f32 %v514, 0.0
    %v605 = vmax.f32 %v519, 0.0
    %v606 = vmax.f32 %v522, 0.0
    %v607 = vmax.f32 %v527, 0.0
    %v608 = vmax.f32 %v530, 0.0
    %v609 = vmax.f32 %v535, 0.0
    %v610 = vmax.f32 %v538, 0.0
    %v611 = vmax.f32 %v543, 0.0
    %v612 = vmax.f32 %v546, 0.0
    %v613 = vpack.c.bf16 %v550, %v549
    %v614 = vpack.c.bf16 %v552, %v551
    %v615 = vpack.c.bf16 %v554, %v553
    %v616 = vpack.c.bf16 %v556, %v555
    %v617 = vpack.c.bf16 %v558, %v557
    %v618 = vpack.c.bf16 %v560, %v559
    %v619 = vpack.c.bf16 %v562, %v561
    %v620 = vpack.c.bf16 %v564, %v563
    %v621 = vpack.c.bf16 %v566, %v565
    %v622 = vpack.c.bf16 %v568, %v567
    %v623 = vpack.c.bf16 %v570, %v569
    %v624 = vpack.c.bf16 %v572, %v571
    %v625 = vpack.c.bf16 %v574, %v573
    %v626 = vpack.c.bf16 %v576, %v575
    %v627 = vpack.c.bf16 %v578, %v577
    %v628 = vpack.c.bf16 %v580, %v579
    %v629 = vpack.c.bf16 %v582, %v581
    %v630 = vpack.c.bf16 %v584, %v583
    %v631 = vpack.c.bf16 %v586, %v585
    %v632 = vpack.c.bf16 %v588, %v587
    %v633 = vpack.c.bf16 %v590, %v589
    %v634 = vpack.c.bf16 %v592, %v591
    %v635 = vpack.c.bf16 %v594, %v593
    %v636 = vpack.c.bf16 %v596, %v595
    %v637 = vpack.c.bf16 %v598, %v597
    %v638 = vpack.c.bf16 %v600, %v599
    %v639 = vpack.c.bf16 %v602, %v601
    %v640 = vpack.c.bf16 %v604, %v603
    %v641 = vpack.c.bf16 %v606, %v605
    %v642 = vpack.c.bf16 %v608, %v607
    %v643 = vpack.c.bf16 %v610, %v609
    %v644 = vpack.c.bf16 %v612, %v611
    %v645 = vld [vmem:[%s3] sm:$0xf]
    %v646 = vld [vmem:[%s3 + $0x4] sm:$0xf]
    %v647 = vld [vmem:[%s3 + $0x8] sm:$0xf]
    %v648 = vld [vmem:[%s3 + $0xc] sm:$0xf]
    %v649 = vld [vmem:[%s3 + $0x10] sm:$0xf]
    %v650 = vld [vmem:[%s3 + $0x14] sm:$0xf]
    %v651 = vld [vmem:[%s3 + $0x18] sm:$0xf]
    %v652 = vld [vmem:[%s3 + $0x1c] sm:$0xf]
    %v653 = vld [vmem:[%s3 + $0x20] sm:$0xf]
    %v654 = vld [vmem:[%s3 + $0x24] sm:$0xf]
    %v655 = vld [vmem:[%s3 + $0x28] sm:$0xf]
    %v656 = vld [vmem:[%s3 + $0x2c] sm:$0xf]
    %v657 = vld [vmem:[%s3 + $0x30] sm:$0xf]
    %v658 = vld [vmem:[%s3 + $0x34] sm:$0xf]
    %v659 = vld [vmem:[%s3 + $0x38] sm:$0xf]
    %v660 = vld [vmem:[%s3 + $0x3c] sm:$0xf]
    %v661 = vld [vmem:[%s4] sm:$0x1]
    %v663 = vlaneseq
    %v664 = vshrl.u32 %v663, 7
    %v665 = vsub.s32 0, %v664
    %v666 = vrot.slane %v661, %v665
    %v684 = vunpack.c.l.b16 %v645
    %v685 = vunpack.c.l.b16 %v646
    %v686 = vunpack.c.l.b16 %v647
    %v687 = vunpack.c.l.b16 %v648
    %v688 = vunpack.c.l.b16 %v649
    %v689 = vunpack.c.l.b16 %v650
    %v690 = vunpack.c.l.b16 %v651
    %v691 = vunpack.c.l.b16 %v652
    %v692 = vunpack.c.l.b16 %v653
    %v693 = vunpack.c.l.b16 %v654
    %v694 = vunpack.c.l.b16 %v655
    %v695 = vunpack.c.l.b16 %v656
    %v696 = vunpack.c.l.b16 %v657
    %v697 = vunpack.c.l.b16 %v658
    %v698 = vunpack.c.l.b16 %v659
    %v699 = vunpack.c.l.b16 %v660
    %v700 = vpack.c.b16 %v685, %v684
    %v701 = vpack.c.b16 %v687, %v686
    %v702 = vpack.c.b16 %v689, %v688
    %v703 = vpack.c.b16 %v691, %v690
    %v704 = vpack.c.b16 %v693, %v692
    %v705 = vpack.c.b16 %v695, %v694
    %v706 = vpack.c.b16 %v697, %v696
    %v707 = vpack.c.b16 %v699, %v698
    %716 = vmatprep.subr.bf16.mxu0 0
    %717 = vmatpush1.bf16.msra.mxu0 %v707
    %718 = vmatprep.subr.bf16.mxu0 0
    %719 = vmatpush1.bf16.msra.mxu0 %v706
    %720 = vmatprep.subr.bf16.mxu0 0
    %721 = vmatpush1.bf16.msra.mxu0 %v705
    %722 = vmatprep.subr.bf16.mxu0 0
    %723 = vmatpush1.bf16.msra.mxu0 %v704
    %724 = vmatprep.subr.bf16.mxu0 0
    %725 = vmatpush1.bf16.msra.mxu0 %v703
    %726 = vmatprep.subr.bf16.mxu0 0
    %727 = vmatpush1.bf16.msra.mxu0 %v702
    %728 = vmatprep.subr.bf16.mxu0 0
    %729 = vmatpush1.bf16.msra.mxu0 %v701
    %730 = vmatprep.subr.bf16.mxu0 0
    %731 = vmatpush1.bf16.msra.mxu0 %v700
    %732 = vmatprep.subr.bf16.mxu0 0
    %733 = vmatpush2.bf16.msra.mxu0 0
    %734 = vmatprep.subr.bf16.mxu0 0
    %735 = vmatpush2.bf16.msra.mxu0 0
    %736 = vmatprep.subr.bf16.mxu0 0
    %737 = vmatpush2.bf16.msra.mxu0 0
    %738 = vmatprep.subr.bf16.mxu0 0
    %739 = vmatpush2.bf16.msra.mxu0 0
    %740 = vmatprep.subr.bf16.mxu0 0
    %741 = vmatpush2.bf16.msra.mxu0 0
    %742 = vmatprep.subr.bf16.mxu0 0
    %743 = vmatpush2.bf16.msra.mxu0 0
    %744 = vmatprep.subr.bf16.mxu0 0
    %745 = vmatpush2.bf16.msra.mxu0 0
    %746 = vmatprep.subr.bf16.mxu0 0
    %747 = vmatpush2.bf16.msra.mxu0 0
    %748 = vmatprep.mubr.bf16.mxu0 0
    %749 = vmatmul.mubr.bf16.gmra.mxu0 %v613
    %v750 = vpop.f32.mrf.mxu0
    %v751 = vadd.f32 %v666, %v750
    %v752 = vpop.f32.mrf.mxu0
    %v753 = vpop.f32.mrf.mxu0
    %v754 = vadd.f32 %v666, %v753
    %v755 = vpop.f32.mrf.mxu0
    %756 = vmatprep.mubr.bf16.mxu0 0
    %757 = vmatmul.mubr.bf16.gmra.mxu0 %v614
    %v758 = vpop.f32.mrf.mxu0
    %v759 = vadd.f32 %v666, %v758
    %v760 = vpop.f32.mrf.mxu0
    %v761 = vpop.f32.mrf.mxu0
    %v762 = vadd.f32 %v666, %v761
    %v763 = vpop.f32.mrf.mxu0
    %764 = vmatprep.mubr.bf16.mxu0 0
    %765 = vmatmul.mubr.bf16.gmra.mxu0 %v615
    %v766 = vpop.f32.mrf.mxu0
    %v767 = vadd.f32 %v666, %v766
    %v768 = vpop.f32.mrf.mxu0
    %v769 = vpop.f32.mrf.mxu0
    %v770 = vadd.f32 %v666, %v769
    %v771 = vpop.f32.mrf.mxu0
    %772 = vmatprep.mubr.bf16.mxu0 0
    %773 = vmatmul.mubr.bf16.gmra.mxu0 %v616
    %v774 = vpop.f32.mrf.mxu0
    %v775 = vadd.f32 %v666, %v774
    %v776 = vpop.f32.mrf.mxu0
    %v777 = vpop.f32.mrf.mxu0
    %v778 = vadd.f32 %v666, %v777
    %v779 = vpop.f32.mrf.mxu0
    %780 = vmatprep.mubr.bf16.mxu0 0
    %781 = vmatmul.mubr.bf16.gmra.mxu0 %v617
    %v782 = vpop.f32.mrf.mxu0
    %v783 = vadd.f32 %v666, %v782
    %v784 = vpop.f32.mrf.mxu0
    %v785 = vpop.f32.mrf.mxu0
    %v786 = vadd.f32 %v666, %v785
    %v787 = vpop.f32.mrf.mxu0
    %788 = vmatprep.mubr.bf16.mxu0 0
    %789 = vmatmul.mubr.bf16.gmra.mxu0 %v618
    %v790 = vpop.f32.mrf.mxu0
    %v791 = vadd.f32 %v666, %v790
    %v792 = vpop.f32.mrf.mxu0
    %v793 = vpop.f32.mrf.mxu0
    %v794 = vadd.f32 %v666, %v793
    %v795 = vpop.f32.mrf.mxu0
    %796 = vmatprep.mubr.bf16.mxu0 0
    %797 = vmatmul.mubr.bf16.gmra.mxu0 %v619
    %v798 = vpop.f32.mrf.mxu0
    %v799 = vadd.f32 %v666, %v798
    %v800 = vpop.f32.mrf.mxu0
    %v801 = vpop.f32.mrf.mxu0
    %v802 = vadd.f32 %v666, %v801
    %v803 = vpop.f32.mrf.mxu0
    %804 = vmatprep.mubr.bf16.mxu0 0
    %805 = vmatmul.mubr.bf16.gmra.mxu0 %v620
    %v806 = vpop.f32.mrf.mxu0
    %v807 = vadd.f32 %v666, %v806
    %v808 = vpop.f32.mrf.mxu0
    %v809 = vpop.f32.mrf.mxu0
    %v810 = vadd.f32 %v666, %v809
    %v811 = vpop.f32.mrf.mxu0
    %812 = vmatprep.mubr.bf16.mxu0 0
    %813 = vmatmul.mubr.bf16.gmra.mxu0 %v621
    %v814 = vpop.f32.mrf.mxu0
    %v815 = vadd.f32 %v666, %v814
    %v816 = vpop.f32.mrf.mxu0
    %v817 = vpop.f32.mrf.mxu0
    %v818 = vadd.f32 %v666, %v817
    %v819 = vpop.f32.mrf.mxu0
    %820 = vmatprep.mubr.bf16.mxu0 0
    %821 = vmatmul.mubr.bf16.gmra.mxu0 %v622
    %v822 = vpop.f32.mrf.mxu0
    %v823 = vadd.f32 %v666, %v822
    %v824 = vpop.f32.mrf.mxu0
    %v825 = vpop.f32.mrf.mxu0
    %v826 = vadd.f32 %v666, %v825
    %v827 = vpop.f32.mrf.mxu0
    %828 = vmatprep.mubr.bf16.mxu0 0
    %829 = vmatmul.mubr.bf16.gmra.mxu0 %v623
    %v830 = vpop.f32.mrf.mxu0
    %v831 = vadd.f32 %v666, %v830
    %v832 = vpop.f32.mrf.mxu0
    %v833 = vpop.f32.mrf.mxu0
    %v834 = vadd.f32 %v666, %v833
    %v835 = vpop.f32.mrf.mxu0
    %836 = vmatprep.mubr.bf16.mxu0 0
    %837 = vmatmul.mubr.bf16.gmra.mxu0 %v624
    %v838 = vpop.f32.mrf.mxu0
    %v839 = vadd.f32 %v666, %v838
    %v840 = vpop.f32.mrf.mxu0
    %v841 = vpop.f32.mrf.mxu0
    %v842 = vadd.f32 %v666, %v841
    %v843 = vpop.f32.mrf.mxu0
    %844 = vmatprep.mubr.bf16.mxu0 0
    %845 = vmatmul.mubr.bf16.gmra.mxu0 %v625
    %v846 = vpop.f32.mrf.mxu0
    %v847 = vadd.f32 %v666, %v846
    %v848 = vpop.f32.mrf.mxu0
    %v849 = vpop.f32.mrf.mxu0
    %v850 = vadd.f32 %v666, %v849
    %v851 = vpop.f32.mrf.mxu0
    %852 = vmatprep.mubr.bf16.mxu0 0
    %853 = vmatmul.mubr.bf16.gmra.mxu0 %v626
    %v854 = vpop.f32.mrf.mxu0
    %v855 = vadd.f32 %v666, %v854
    %v856 = vpop.f32.mrf.mxu0
    %v857 = vpop.f32.mrf.mxu0
    %v858 = vadd.f32 %v666, %v857
    %v859 = vpop.f32.mrf.mxu0
    %860 = vmatprep.mubr.bf16.mxu0 0
    %861 = vmatmul.mubr.bf16.gmra.mxu0 %v627
    %v862 = vpop.f32.mrf.mxu0
    %v863 = vadd.f32 %v666, %v862
    %v864 = vpop.f32.mrf.mxu0
    %v865 = vpop.f32.mrf.mxu0
    %v866 = vadd.f32 %v666, %v865
    %v867 = vpop.f32.mrf.mxu0
    %868 = vmatprep.mubr.bf16.mxu0 0
    %869 = vmatmul.mubr.bf16.gmra.mxu0 %v628
    %v870 = vpop.f32.mrf.mxu0
    %v871 = vadd.f32 %v666, %v870
    %v872 = vpop.f32.mrf.mxu0
    %v873 = vpop.f32.mrf.mxu0
    %v874 = vadd.f32 %v666, %v873
    %v875 = vpop.f32.mrf.mxu0
    %876 = vmatprep.mubr.bf16.mxu0 0
    %877 = vmatmul.mubr.bf16.gmra.mxu0 %v629
    %v878 = vpop.f32.mrf.mxu0
    %v879 = vadd.f32 %v666, %v878
    %v880 = vpop.f32.mrf.mxu0
    %v881 = vpop.f32.mrf.mxu0
    %v882 = vadd.f32 %v666, %v881
    %v883 = vpop.f32.mrf.mxu0
    %884 = vmatprep.mubr.bf16.mxu0 0
    %885 = vmatmul.mubr.bf16.gmra.mxu0 %v630
    %v886 = vpop.f32.mrf.mxu0
    %v887 = vadd.f32 %v666, %v886
    %v888 = vpop.f32.mrf.mxu0
    %v889 = vpop.f32.mrf.mxu0
    %v890 = vadd.f32 %v666, %v889
    %v891 = vpop.f32.mrf.mxu0
    %892 = vmatprep.mubr.bf16.mxu0 0
    %893 = vmatmul.mubr.bf16.gmra.mxu0 %v631
    %v894 = vpop.f32.mrf.mxu0
    %v895 = vadd.f32 %v666, %v894
    %v896 = vpop.f32.mrf.mxu0
    %v897 = vpop.f32.mrf.mxu0
    %v898 = vadd.f32 %v666, %v897
    %v899 = vpop.f32.mrf.mxu0
    %900 = vmatprep.mubr.bf16.mxu0 0
    %901 = vmatmul.mubr.bf16.gmra.mxu0 %v632
    %v902 = vpop.f32.mrf.mxu0
    %v903 = vadd.f32 %v666, %v902
    %v904 = vpop.f32.mrf.mxu0
    %v905 = vpop.f32.mrf.mxu0
    %v906 = vadd.f32 %v666, %v905
    %v907 = vpop.f32.mrf.mxu0
    %908 = vmatprep.mubr.bf16.mxu0 0
    %909 = vmatmul.mubr.bf16.gmra.mxu0 %v633
    %v910 = vpop.f32.mrf.mxu0
    %v911 = vadd.f32 %v666, %v910
    %v912 = vpop.f32.mrf.mxu0
    %v913 = vpop.f32.mrf.mxu0
    %v914 = vadd.f32 %v666, %v913
    %v915 = vpop.f32.mrf.mxu0
    %916 = vmatprep.mubr.bf16.mxu0 0
    %917 = vmatmul.mubr.bf16.gmra.mxu0 %v634
    %v918 = vpop.f32.mrf.mxu0
    %v919 = vadd.f32 %v666, %v918
    %v920 = vpop.f32.mrf.mxu0
    %v921 = vpop.f32.mrf.mxu0
    %v922 = vadd.f32 %v666, %v921
    %v923 = vpop.f32.mrf.mxu0
    %924 = vmatprep.mubr.bf16.mxu0 0
    %925 = vmatmul.mubr.bf16.gmra.mxu0 %v635
    %v926 = vpop.f32.mrf.mxu0
    %v927 = vadd.f32 %v666, %v926
    %v928 = vpop.f32.mrf.mxu0
    %v929 = vpop.f32.mrf.mxu0
    %v930 = vadd.f32 %v666, %v929
    %v931 = vpop.f32.mrf.mxu0
    %932 = vmatprep.mubr.bf16.mxu0 0
    %933 = vmatmul.mubr.bf16.gmra.mxu0 %v636
    %v934 = vpop.f32.mrf.mxu0
    %v935 = vadd.f32 %v666, %v934
    %v936 = vpop.f32.mrf.mxu0
    %v937 = vpop.f32.mrf.mxu0
    %v938 = vadd.f32 %v666, %v937
    %v939 = vpop.f32.mrf.mxu0
    %940 = vmatprep.mubr.bf16.mxu0 0
    %941 = vmatmul.mubr.bf16.gmra.mxu0 %v637
    %v942 = vpop.f32.mrf.mxu0
    %v943 = vadd.f32 %v666, %v942
    %v944 = vpop.f32.mrf.mxu0
    %v945 = vpop.f32.mrf.mxu0
    %v946 = vadd.f32 %v666, %v945
    %v947 = vpop.f32.mrf.mxu0
    %948 = vmatprep.mubr.bf16.mxu0 0
    %949 = vmatmul.mubr.bf16.gmra.mxu0 %v638
    %v950 = vpop.f32.mrf.mxu0
    %v951 = vadd.f32 %v666, %v950
    %v952 = vpop.f32.mrf.mxu0
    %v953 = vpop.f32.mrf.mxu0
    %v954 = vadd.f32 %v666, %v953
    %v955 = vpop.f32.mrf.mxu0
    %956 = vmatprep.mubr.bf16.mxu0 0
    %957 = vmatmul.mubr.bf16.gmra.mxu0 %v639
    %v958 = vpop.f32.mrf.mxu0
    %v959 = vadd.f32 %v666, %v958
    %v960 = vpop.f32.mrf.mxu0
    %v961 = vpop.f32.mrf.mxu0
    %v962 = vadd.f32 %v666, %v961
    %v963 = vpop.f32.mrf.mxu0
    %964 = vmatprep.mubr.bf16.mxu0 0
    %965 = vmatmul.mubr.bf16.gmra.mxu0 %v640
    %v966 = vpop.f32.mrf.mxu0
    %v967 = vadd.f32 %v666, %v966
    %v968 = vpop.f32.mrf.mxu0
    %v969 = vpop.f32.mrf.mxu0
    %v970 = vadd.f32 %v666, %v969
    %v971 = vpop.f32.mrf.mxu0
    %972 = vmatprep.mubr.bf16.mxu0 0
    %973 = vmatmul.mubr.bf16.gmra.mxu0 %v641
    %v974 = vpop.f32.mrf.mxu0
    %v975 = vadd.f32 %v666, %v974
    %v976 = vpop.f32.mrf.mxu0
    %v977 = vpop.f32.mrf.mxu0
    %v978 = vadd.f32 %v666, %v977
    %v979 = vpop.f32.mrf.mxu0
    %980 = vmatprep.mubr.bf16.mxu0 0
    %981 = vmatmul.mubr.bf16.gmra.mxu0 %v642
    %v982 = vpop.f32.mrf.mxu0
    %v983 = vadd.f32 %v666, %v982
    %v984 = vpop.f32.mrf.mxu0
    %v985 = vpop.f32.mrf.mxu0
    %v986 = vadd.f32 %v666, %v985
    %v987 = vpop.f32.mrf.mxu0
    %988 = vmatprep.mubr.bf16.mxu0 0
    %989 = vmatmul.mubr.bf16.gmra.mxu0 %v643
    %v990 = vpop.f32.mrf.mxu0
    %v991 = vadd.f32 %v666, %v990
    %v992 = vpop.f32.mrf.mxu0
    %v993 = vpop.f32.mrf.mxu0
    %v994 = vadd.f32 %v666, %v993
    %v995 = vpop.f32.mrf.mxu0
    %996 = vmatprep.mubr.bf16.mxu0 0
    %997 = vmatmul.mubr.bf16.gmra.mxu0 %v644
    %v998 = vpop.f32.mrf.mxu0
    %v999 = vadd.f32 %v666, %v998
    %v1000 = vpop.f32.mrf.mxu0
    %v1001 = vpop.f32.mrf.mxu0
    %v1002 = vadd.f32 %v666, %v1001
    %v1003 = vpop.f32.mrf.mxu0
    %1004 = vdwg.mxu0
    %v1005 = vmax.f32 %v751, 0.0
    %v1006 = vmax.f32 %v754, 0.0
    %v1007 = vmax.f32 %v759, 0.0
    %v1008 = vmax.f32 %v762, 0.0
    %v1009 = vmax.f32 %v767, 0.0
    %v1010 = vmax.f32 %v770, 0.0
    %v1011 = vmax.f32 %v775, 0.0
    %v1012 = vmax.f32 %v778, 0.0
    %v1013 = vmax.f32 %v783, 0.0
    %v1014 = vmax.f32 %v786, 0.0
    %v1015 = vmax.f32 %v791, 0.0
    %v1016 = vmax.f32 %v794, 0.0
    %v1017 = vmax.f32 %v799, 0.0
    %v1018 = vmax.f32 %v802, 0.0
    %v1019 = vmax.f32 %v807, 0.0
    %v1020 = vmax.f32 %v810, 0.0
    %v1021 = vmax.f32 %v815, 0.0
    %v1022 = vmax.f32 %v818, 0.0
    %v1023 = vmax.f32 %v823, 0.0
    %v1024 = vmax.f32 %v826, 0.0
    %v1025 = vmax.f32 %v831, 0.0
    %v1026 = vmax.f32 %v834, 0.0
    %v1027 = vmax.f32 %v839, 0.0
    %v1028 = vmax.f32 %v842, 0.0
    %v1029 = vmax.f32 %v847, 0.0
    %v1030 = vmax.f32 %v850, 0.0
    %v1031 = vmax.f32 %v855, 0.0
    %v1032 = vmax.f32 %v858, 0.0
    %v1033 = vmax.f32 %v863, 0.0
    %v1034 = vmax.f32 %v866, 0.0
    %v1035 = vmax.f32 %v871, 0.0
    %v1036 = vmax.f32 %v874, 0.0
    %v1037 = vmax.f32 %v879, 0.0
    %v1038 = vmax.f32 %v882, 0.0
    %v1039 = vmax.f32 %v887, 0.0
    %v1040 = vmax.f32 %v890, 0.0
    %v1041 = vmax.f32 %v895, 0.0
    %v1042 = vmax.f32 %v898, 0.0
    %v1043 = vmax.f32 %v903, 0.0
    %v1044 = vmax.f32 %v906, 0.0
    %v1045 = vmax.f32 %v911, 0.0
    %v1046 = vmax.f32 %v914, 0.0
    %v1047 = vmax.f32 %v919, 0.0
    %v1048 = vmax.f32 %v922, 0.0
    %v1049 = vmax.f32 %v927, 0.0
    %v1050 = vmax.f32 %v930, 0.0
    %v1051 = vmax.f32 %v935, 0.0
    %v1052 = vmax.f32 %v938, 0.0
    %v1053 = vmax.f32 %v943, 0.0
    %v1054 = vmax.f32 %v946, 0.0
    %v1055 = vmax.f32 %v951, 0.0
    %v1056 = vmax.f32 %v954, 0.0
    %v1057 = vmax.f32 %v959, 0.0
    %v1058 = vmax.f32 %v962, 0.0
    %v1059 = vmax.f32 %v967, 0.0
    %v1060 = vmax.f32 %v970, 0.0
    %v1061 = vmax.f32 %v975, 0.0
    %v1062 = vmax.f32 %v978, 0.0
    %v1063 = vmax.f32 %v983, 0.0
    %v1064 = vmax.f32 %v986, 0.0
    %v1065 = vmax.f32 %v991, 0.0
    %v1066 = vmax.f32 %v994, 0.0
    %v1067 = vmax.f32 %v999, 0.0
    %v1068 = vmax.f32 %v1002, 0.0
    %v1069 = vpack.c.bf16 %v1006, %v1005
    %v1070 = vpack.c.bf16 %v1008, %v1007
    %v1071 = vpack.c.bf16 %v1010, %v1009
    %v1072 = vpack.c.bf16 %v1012, %v1011
    %v1073 = vpack.c.bf16 %v1014, %v1013
    %v1074 = vpack.c.bf16 %v1016, %v1015
    %v1075 = vpack.c.bf16 %v1018, %v1017
    %v1076 = vpack.c.bf16 %v1020, %v1019
    %v1077 = vpack.c.bf16 %v1022, %v1021
    %v1078 = vpack.c.bf16 %v1024, %v1023
    %v1079 = vpack.c.bf16 %v1026, %v1025
    %v1080 = vpack.c.bf16 %v1028, %v1027
    %v1081 = vpack.c.bf16 %v1030, %v1029
    %v1082 = vpack.c.bf16 %v1032, %v1031
    %v1083 = vpack.c.bf16 %v1034, %v1033
    %v1084 = vpack.c.bf16 %v1036, %v1035
    %v1085 = vpack.c.bf16 %v1038, %v1037
    %v1086 = vpack.c.bf16 %v1040, %v1039
    %v1087 = vpack.c.bf16 %v1042, %v1041
    %v1088 = vpack.c.bf16 %v1044, %v1043
    %v1089 = vpack.c.bf16 %v1046, %v1045
    %v1090 = vpack.c.bf16 %v1048, %v1047
    %v1091 = vpack.c.bf16 %v1050, %v1049
    %v1092 = vpack.c.bf16 %v1052, %v1051
    %v1093 = vpack.c.bf16 %v1054, %v1053
    %v1094 = vpack.c.bf16 %v1056, %v1055
    %v1095 = vpack.c.bf16 %v1058, %v1057
    %v1096 = vpack.c.bf16 %v1060, %v1059
    %v1097 = vpack.c.bf16 %v1062, %v1061
    %v1098 = vpack.c.bf16 %v1064, %v1063
    %v1099 = vpack.c.bf16 %v1066, %v1065
    %v1100 = vpack.c.bf16 %v1068, %v1067
    %v1101 = vld [vmem:[%s5] sm:$0xf]
    %v1102 = vld [vmem:[%s5 + $0x4] sm:$0xf]
    %v1103 = vld [vmem:[%s5 + $0x8] sm:$0xf]
    %v1104 = vld [vmem:[%s5 + $0xc] sm:$0xf]
    %v1105 = vld [vmem:[%s5 + $0x10] sm:$0xf]
    %v1106 = vld [vmem:[%s5 + $0x14] sm:$0xf]
    %v1107 = vld [vmem:[%s5 + $0x18] sm:$0xf]
    %v1108 = vld [vmem:[%s5 + $0x1c] sm:$0xf]
    %v1109 = vld [vmem:[%s5 + $0x20] sm:$0xf]
    %v1110 = vld [vmem:[%s5 + $0x24] sm:$0xf]
    %v1111 = vld [vmem:[%s5 + $0x28] sm:$0xf]
    %v1112 = vld [vmem:[%s5 + $0x2c] sm:$0xf]
    %v1113 = vld [vmem:[%s5 + $0x30] sm:$0xf]
    %v1114 = vld [vmem:[%s5 + $0x34] sm:$0xf]
    %v1115 = vld [vmem:[%s5 + $0x38] sm:$0xf]
    %v1116 = vld [vmem:[%s5 + $0x3c] sm:$0xf]
    %v1117 = vld [vmem:[%s6] sm:$0x1]
    %v1119 = vlaneseq
    %v1120 = vshrl.u32 %v1119, 7
    %v1121 = vsub.s32 0, %v1120
    %v1122 = vrot.slane %v1117, %v1121
    %v1140 = vunpack.c.l.b16 %v1101
    %v1141 = vunpack.c.l.b16 %v1102
    %v1142 = vunpack.c.l.b16 %v1103
    %v1143 = vunpack.c.l.b16 %v1104
    %v1144 = vunpack.c.l.b16 %v1105
    %v1145 = vunpack.c.l.b16 %v1106
    %v1146 = vunpack.c.l.b16 %v1107
    %v1147 = vunpack.c.l.b16 %v1108
    %v1148 = vunpack.c.l.b16 %v1109
    %v1149 = vunpack.c.l.b16 %v1110
    %v1150 = vunpack.c.l.b16 %v1111
    %v1151 = vunpack.c.l.b16 %v1112
    %v1152 = vunpack.c.l.b16 %v1113
    %v1153 = vunpack.c.l.b16 %v1114
    %v1154 = vunpack.c.l.b16 %v1115
    %v1155 = vunpack.c.l.b16 %v1116
    %v1156 = vpack.c.b16 %v1141, %v1140
    %v1157 = vpack.c.b16 %v1143, %v1142
    %v1158 = vpack.c.b16 %v1145, %v1144
    %v1159 = vpack.c.b16 %v1147, %v1146
    %v1160 = vpack.c.b16 %v1149, %v1148
    %v1161 = vpack.c.b16 %v1151, %v1150
    %v1162 = vpack.c.b16 %v1153, %v1152
    %v1163 = vpack.c.b16 %v1155, %v1154
    %1172 = vmatprep.subr.bf16.mxu0 0
    %1173 = vmatpush1.bf16.msra.mxu0 %v1163
    %1174 = vmatprep.subr.bf16.mxu0 0
    %1175 = vmatpush1.bf16.msra.mxu0 %v1162
    %1176 = vmatprep.subr.bf16.mxu0 0
    %1177 = vmatpush1.bf16.msra.mxu0 %v1161
    %1178 = vmatprep.subr.bf16.mxu0 0
    %1179 = vmatpush1.bf16.msra.mxu0 %v1160
    %1180 = vmatprep.subr.bf16.mxu0 0
    %1181 = vmatpush1.bf16.msra.mxu0 %v1159
    %1182 = vmatprep.subr.bf16.mxu0 0
    %1183 = vmatpush1.bf16.msra.mxu0 %v1158
    %1184 = vmatprep.subr.bf16.mxu0 0
    %1185 = vmatpush1.bf16.msra.mxu0 %v1157
    %1186 = vmatprep.subr.bf16.mxu0 0
    %1187 = vmatpush1.bf16.msra.mxu0 %v1156
    %1188 = vmatprep.subr.bf16.mxu0 0
    %1189 = vmatpush2.bf16.msra.mxu0 0
    %1190 = vmatprep.subr.bf16.mxu0 0
    %1191 = vmatpush2.bf16.msra.mxu0 0
    %1192 = vmatprep.subr.bf16.mxu0 0
    %1193 = vmatpush2.bf16.msra.mxu0 0
    %1194 = vmatprep.subr.bf16.mxu0 0
    %1195 = vmatpush2.bf16.msra.mxu0 0
    %1196 = vmatprep.subr.bf16.mxu0 0
    %1197 = vmatpush2.bf16.msra.mxu0 0
    %1198 = vmatprep.subr.bf16.mxu0 0
    %1199 = vmatpush2.bf16.msra.mxu0 0
    %1200 = vmatprep.subr.bf16.mxu0 0
    %1201 = vmatpush2.bf16.msra.mxu0 0
    %1202 = vmatprep.subr.bf16.mxu0 0
    %1203 = vmatpush2.bf16.msra.mxu0 0
    %1204 = vmatprep.mubr.bf16.mxu0 0
    %1205 = vmatmul.mubr.bf16.gmra.mxu0 %v1069
    %v1206 = vpop.f32.mrf.mxu0
    %v1207 = vadd.f32 %v1122, %v1206
    %v1208 = vpop.f32.mrf.mxu0
    %v1209 = vpop.f32.mrf.mxu0
    %v1210 = vadd.f32 %v1122, %v1209
    %v1211 = vpop.f32.mrf.mxu0
    %1212 = vmatprep.mubr.bf16.mxu0 0
    %1213 = vmatmul.mubr.bf16.gmra.mxu0 %v1070
    %v1214 = vpop.f32.mrf.mxu0
    %v1215 = vadd.f32 %v1122, %v1214
    %v1216 = vpop.f32.mrf.mxu0
    %v1217 = vpop.f32.mrf.mxu0
    %v1218 = vadd.f32 %v1122, %v1217
    %v1219 = vpop.f32.mrf.mxu0
    %1220 = vmatprep.mubr.bf16.mxu0 0
    %1221 = vmatmul.mubr.bf16.gmra.mxu0 %v1071
    %v1222 = vpop.f32.mrf.mxu0
    %v1223 = vadd.f32 %v1122, %v1222
    %v1224 = vpop.f32.mrf.mxu0
    %v1225 = vpop.f32.mrf.mxu0
    %v1226 = vadd.f32 %v1122, %v1225
    %v1227 = vpop.f32.mrf.mxu0
    %1228 = vmatprep.mubr.bf16.mxu0 0
    %1229 = vmatmul.mubr.bf16.gmra.mxu0 %v1072
    %v1230 = vpop.f32.mrf.mxu0
    %v1231 = vadd.f32 %v1122, %v1230
    %v1232 = vpop.f32.mrf.mxu0
    %v1233 = vpop.f32.mrf.mxu0
    %v1234 = vadd.f32 %v1122, %v1233
    %v1235 = vpop.f32.mrf.mxu0
    %1236 = vmatprep.mubr.bf16.mxu0 0
    %1237 = vmatmul.mubr.bf16.gmra.mxu0 %v1073
    %v1238 = vpop.f32.mrf.mxu0
    %v1239 = vadd.f32 %v1122, %v1238
    %v1240 = vpop.f32.mrf.mxu0
    %v1241 = vpop.f32.mrf.mxu0
    %v1242 = vadd.f32 %v1122, %v1241
    %v1243 = vpop.f32.mrf.mxu0
    %1244 = vmatprep.mubr.bf16.mxu0 0
    %1245 = vmatmul.mubr.bf16.gmra.mxu0 %v1074
    %v1246 = vpop.f32.mrf.mxu0
    %v1247 = vadd.f32 %v1122, %v1246
    %v1248 = vpop.f32.mrf.mxu0
    %v1249 = vpop.f32.mrf.mxu0
    %v1250 = vadd.f32 %v1122, %v1249
    %v1251 = vpop.f32.mrf.mxu0
    %1252 = vmatprep.mubr.bf16.mxu0 0
    %1253 = vmatmul.mubr.bf16.gmra.mxu0 %v1075
    %v1254 = vpop.f32.mrf.mxu0
    %v1255 = vadd.f32 %v1122, %v1254
    %v1256 = vpop.f32.mrf.mxu0
    %v1257 = vpop.f32.mrf.mxu0
    %v1258 = vadd.f32 %v1122, %v1257
    %v1259 = vpop.f32.mrf.mxu0
    %1260 = vmatprep.mubr.bf16.mxu0 0
    %1261 = vmatmul.mubr.bf16.gmra.mxu0 %v1076
    %v1262 = vpop.f32.mrf.mxu0
    %v1263 = vadd.f32 %v1122, %v1262
    %v1264 = vpop.f32.mrf.mxu0
    %v1265 = vpop.f32.mrf.mxu0
    %v1266 = vadd.f32 %v1122, %v1265
    %v1267 = vpop.f32.mrf.mxu0
    %1268 = vmatprep.mubr.bf16.mxu0 0
    %1269 = vmatmul.mubr.bf16.gmra.mxu0 %v1077
    %v1270 = vpop.f32.mrf.mxu0
    %v1271 = vadd.f32 %v1122, %v1270
    %v1272 = vpop.f32.mrf.mxu0
    %v1273 = vpop.f32.mrf.mxu0
    %v1274 = vadd.f32 %v1122, %v1273
    %v1275 = vpop.f32.mrf.mxu0
    %1276 = vmatprep.mubr.bf16.mxu0 0
    %1277 = vmatmul.mubr.bf16.gmra.mxu0 %v1078
    %v1278 = vpop.f32.mrf.mxu0
    %v1279 = vadd.f32 %v1122, %v1278
    %v1280 = vpop.f32.mrf.mxu0
    %v1281 = vpop.f32.mrf.mxu0
    %v1282 = vadd.f32 %v1122, %v1281
    %v1283 = vpop.f32.mrf.mxu0
    %1284 = vmatprep.mubr.bf16.mxu0 0
    %1285 = vmatmul.mubr.bf16.gmra.mxu0 %v1079
    %v1286 = vpop.f32.mrf.mxu0
    %v1287 = vadd.f32 %v1122, %v1286
    %v1288 = vpop.f32.mrf.mxu0
    %v1289 = vpop.f32.mrf.mxu0
    %v1290 = vadd.f32 %v1122, %v1289
    %v1291 = vpop.f32.mrf.mxu0
    %1292 = vmatprep.mubr.bf16.mxu0 0
    %1293 = vmatmul.mubr.bf16.gmra.mxu0 %v1080
    %v1294 = vpop.f32.mrf.mxu0
    %v1295 = vadd.f32 %v1122, %v1294
    %v1296 = vpop.f32.mrf.mxu0
    %v1297 = vpop.f32.mrf.mxu0
    %v1298 = vadd.f32 %v1122, %v1297
    %v1299 = vpop.f32.mrf.mxu0
    %1300 = vmatprep.mubr.bf16.mxu0 0
    %1301 = vmatmul.mubr.bf16.gmra.mxu0 %v1081
    %v1302 = vpop.f32.mrf.mxu0
    %v1303 = vadd.f32 %v1122, %v1302
    %v1304 = vpop.f32.mrf.mxu0
    %v1305 = vpop.f32.mrf.mxu0
    %v1306 = vadd.f32 %v1122, %v1305
    %v1307 = vpop.f32.mrf.mxu0
    %1308 = vmatprep.mubr.bf16.mxu0 0
    %1309 = vmatmul.mubr.bf16.gmra.mxu0 %v1082
    %v1310 = vpop.f32.mrf.mxu0
    %v1311 = vadd.f32 %v1122, %v1310
    %v1312 = vpop.f32.mrf.mxu0
    %v1313 = vpop.f32.mrf.mxu0
    %v1314 = vadd.f32 %v1122, %v1313
    %v1315 = vpop.f32.mrf.mxu0
    %1316 = vmatprep.mubr.bf16.mxu0 0
    %1317 = vmatmul.mubr.bf16.gmra.mxu0 %v1083
    %v1318 = vpop.f32.mrf.mxu0
    %v1319 = vadd.f32 %v1122, %v1318
    %v1320 = vpop.f32.mrf.mxu0
    %v1321 = vpop.f32.mrf.mxu0
    %v1322 = vadd.f32 %v1122, %v1321
    %v1323 = vpop.f32.mrf.mxu0
    %1324 = vmatprep.mubr.bf16.mxu0 0
    %1325 = vmatmul.mubr.bf16.gmra.mxu0 %v1084
    %v1326 = vpop.f32.mrf.mxu0
    %v1327 = vadd.f32 %v1122, %v1326
    %v1328 = vpop.f32.mrf.mxu0
    %v1329 = vpop.f32.mrf.mxu0
    %v1330 = vadd.f32 %v1122, %v1329
    %v1331 = vpop.f32.mrf.mxu0
    %1332 = vmatprep.mubr.bf16.mxu0 0
    %1333 = vmatmul.mubr.bf16.gmra.mxu0 %v1085
    %v1334 = vpop.f32.mrf.mxu0
    %v1335 = vadd.f32 %v1122, %v1334
    %v1336 = vpop.f32.mrf.mxu0
    %v1337 = vpop.f32.mrf.mxu0
    %v1338 = vadd.f32 %v1122, %v1337
    %v1339 = vpop.f32.mrf.mxu0
    %1340 = vmatprep.mubr.bf16.mxu0 0
    %1341 = vmatmul.mubr.bf16.gmra.mxu0 %v1086
    %v1342 = vpop.f32.mrf.mxu0
    %v1343 = vadd.f32 %v1122, %v1342
    %v1344 = vpop.f32.mrf.mxu0
    %v1345 = vpop.f32.mrf.mxu0
    %v1346 = vadd.f32 %v1122, %v1345
    %v1347 = vpop.f32.mrf.mxu0
    %1348 = vmatprep.mubr.bf16.mxu0 0
    %1349 = vmatmul.mubr.bf16.gmra.mxu0 %v1087
    %v1350 = vpop.f32.mrf.mxu0
    %v1351 = vadd.f32 %v1122, %v1350
    %v1352 = vpop.f32.mrf.mxu0
    %v1353 = vpop.f32.mrf.mxu0
    %v1354 = vadd.f32 %v1122, %v1353
    %v1355 = vpop.f32.mrf.mxu0
    %1356 = vmatprep.mubr.bf16.mxu0 0
    %1357 = vmatmul.mubr.bf16.gmra.mxu0 %v1088
    %v1358 = vpop.f32.mrf.mxu0
    %v1359 = vadd.f32 %v1122, %v1358
    %v1360 = vpop.f32.mrf.mxu0
    %v1361 = vpop.f32.mrf.mxu0
    %v1362 = vadd.f32 %v1122, %v1361
    %v1363 = vpop.f32.mrf.mxu0
    %1364 = vmatprep.mubr.bf16.mxu0 0
    %1365 = vmatmul.mubr.bf16.gmra.mxu0 %v1089
    %v1366 = vpop.f32.mrf.mxu0
    %v1367 = vadd.f32 %v1122, %v1366
    %v1368 = vpop.f32.mrf.mxu0
    %v1369 = vpop.f32.mrf.mxu0
    %v1370 = vadd.f32 %v1122, %v1369
    %v1371 = vpop.f32.mrf.mxu0
    %1372 = vmatprep.mubr.bf16.mxu0 0
    %1373 = vmatmul.mubr.bf16.gmra.mxu0 %v1090
    %v1374 = vpop.f32.mrf.mxu0
    %v1375 = vadd.f32 %v1122, %v1374
    %v1376 = vpop.f32.mrf.mxu0
    %v1377 = vpop.f32.mrf.mxu0
    %v1378 = vadd.f32 %v1122, %v1377
    %v1379 = vpop.f32.mrf.mxu0
    %1380 = vmatprep.mubr.bf16.mxu0 0
    %1381 = vmatmul.mubr.bf16.gmra.mxu0 %v1091
    %v1382 = vpop.f32.mrf.mxu0
    %v1383 = vadd.f32 %v1122, %v1382
    %v1384 = vpop.f32.mrf.mxu0
    %v1385 = vpop.f32.mrf.mxu0
    %v1386 = vadd.f32 %v1122, %v1385
    %v1387 = vpop.f32.mrf.mxu0
    %1388 = vmatprep.mubr.bf16.mxu0 0
    %1389 = vmatmul.mubr.bf16.gmra.mxu0 %v1092
    %v1390 = vpop.f32.mrf.mxu0
    %v1391 = vadd.f32 %v1122, %v1390
    %v1392 = vpop.f32.mrf.mxu0
    %v1393 = vpop.f32.mrf.mxu0
    %v1394 = vadd.f32 %v1122, %v1393
    %v1395 = vpop.f32.mrf.mxu0
    %1396 = vmatprep.mubr.bf16.mxu0 0
    %1397 = vmatmul.mubr.bf16.gmra.mxu0 %v1093
    %v1398 = vpop.f32.mrf.mxu0
    %v1399 = vadd.f32 %v1122, %v1398
    %v1400 = vpop.f32.mrf.mxu0
    %v1401 = vpop.f32.mrf.mxu0
    %v1402 = vadd.f32 %v1122, %v1401
    %v1403 = vpop.f32.mrf.mxu0
    %1404 = vmatprep.mubr.bf16.mxu0 0
    %1405 = vmatmul.mubr.bf16.gmra.mxu0 %v1094
    %v1406 = vpop.f32.mrf.mxu0
    %v1407 = vadd.f32 %v1122, %v1406
    %v1408 = vpop.f32.mrf.mxu0
    %v1409 = vpop.f32.mrf.mxu0
    %v1410 = vadd.f32 %v1122, %v1409
    %v1411 = vpop.f32.mrf.mxu0
    %1412 = vmatprep.mubr.bf16.mxu0 0
    %1413 = vmatmul.mubr.bf16.gmra.mxu0 %v1095
    %v1414 = vpop.f32.mrf.mxu0
    %v1415 = vadd.f32 %v1122, %v1414
    %v1416 = vpop.f32.mrf.mxu0
    %v1417 = vpop.f32.mrf.mxu0
    %v1418 = vadd.f32 %v1122, %v1417
    %v1419 = vpop.f32.mrf.mxu0
    %1420 = vmatprep.mubr.bf16.mxu0 0
    %1421 = vmatmul.mubr.bf16.gmra.mxu0 %v1096
    %v1422 = vpop.f32.mrf.mxu0
    %v1423 = vadd.f32 %v1122, %v1422
    %v1424 = vpop.f32.mrf.mxu0
    %v1425 = vpop.f32.mrf.mxu0
    %v1426 = vadd.f32 %v1122, %v1425
    %v1427 = vpop.f32.mrf.mxu0
    %1428 = vmatprep.mubr.bf16.mxu0 0
    %1429 = vmatmul.mubr.bf16.gmra.mxu0 %v1097
    %v1430 = vpop.f32.mrf.mxu0
    %v1431 = vadd.f32 %v1122, %v1430
    %v1432 = vpop.f32.mrf.mxu0
    %v1433 = vpop.f32.mrf.mxu0
    %v1434 = vadd.f32 %v1122, %v1433
    %v1435 = vpop.f32.mrf.mxu0
    %1436 = vmatprep.mubr.bf16.mxu0 0
    %1437 = vmatmul.mubr.bf16.gmra.mxu0 %v1098
    %v1438 = vpop.f32.mrf.mxu0
    %v1439 = vadd.f32 %v1122, %v1438
    %v1440 = vpop.f32.mrf.mxu0
    %v1441 = vpop.f32.mrf.mxu0
    %v1442 = vadd.f32 %v1122, %v1441
    %v1443 = vpop.f32.mrf.mxu0
    %1444 = vmatprep.mubr.bf16.mxu0 0
    %1445 = vmatmul.mubr.bf16.gmra.mxu0 %v1099
    %v1446 = vpop.f32.mrf.mxu0
    %v1447 = vadd.f32 %v1122, %v1446
    %v1448 = vpop.f32.mrf.mxu0
    %v1449 = vpop.f32.mrf.mxu0
    %v1450 = vadd.f32 %v1122, %v1449
    %v1451 = vpop.f32.mrf.mxu0
    %1452 = vmatprep.mubr.bf16.mxu0 0
    %1453 = vmatmul.mubr.bf16.gmra.mxu0 %v1100
    %v1454 = vpop.f32.mrf.mxu0
    %v1455 = vadd.f32 %v1122, %v1454
    %v1456 = vpop.f32.mrf.mxu0
    %v1457 = vpop.f32.mrf.mxu0
    %v1458 = vadd.f32 %v1122, %v1457
    %v1459 = vpop.f32.mrf.mxu0
    %1460 = vdwg.mxu0
    %v1461 = vxor.u32 %v1207, 2147483648
    %v1462 = vxor.u32 %v1210, 2147483648
    %v1463 = vxor.u32 %v1215, 2147483648
    %v1464 = vxor.u32 %v1218, 2147483648
    %v1465 = vxor.u32 %v1223, 2147483648
    %v1466 = vxor.u32 %v1226, 2147483648
    %v1467 = vxor.u32 %v1231, 2147483648
    %v1468 = vxor.u32 %v1234, 2147483648
    %v1469 = vxor.u32 %v1239, 2147483648
    %v1470 = vxor.u32 %v1242, 2147483648
    %v1471 = vxor.u32 %v1247, 2147483648
    %v1472 = vxor.u32 %v1250, 2147483648
    %v1473 = vxor.u32 %v1255, 2147483648
    %v1474 = vxor.u32 %v1258, 2147483648
    %v1475 = vxor.u32 %v1263, 2147483648
    %v1476 = vxor.u32 %v1266, 2147483648
    %v1477 = vxor.u32 %v1271, 2147483648
    %v1478 = vxor.u32 %v1274, 2147483648
    %v1479 = vxor.u32 %v1279, 2147483648
    %v1480 = vxor.u32 %v1282, 2147483648
    %v1481 = vxor.u32 %v1287, 2147483648
    %v1482 = vxor.u32 %v1290, 2147483648
    %v1483 = vxor.u32 %v1295, 2147483648
    %v1484 = vxor.u32 %v1298, 2147483648
    %v1485 = vxor.u32 %v1303, 2147483648
    %v1486 = vxor.u32 %v1306, 2147483648
    %v1487 = vxor.u32 %v1311, 2147483648
    %v1488 = vxor.u32 %v1314, 2147483648
    %v1489 = vxor.u32 %v1319, 2147483648
    %v1490 = vxor.u32 %v1322, 2147483648
    %v1491 = vxor.u32 %v1327, 2147483648
    %v1492 = vxor.u32 %v1330, 2147483648
    %v1493 = vxor.u32 %v1335, 2147483648
    %v1494 = vxor.u32 %v1338, 2147483648
    %v1495 = vxor.u32 %v1343, 2147483648
    %v1496 = vxor.u32 %v1346, 2147483648
    %v1497 = vxor.u32 %v1351, 2147483648
    %v1498 = vxor.u32 %v1354, 2147483648
    %v1499 = vxor.u32 %v1359, 2147483648
    %v1500 = vxor.u32 %v1362, 2147483648
    %v1501 = vxor.u32 %v1367, 2147483648
    %v1502 = vxor.u32 %v1370, 2147483648
    %v1503 = vxor.u32 %v1375, 2147483648
    %v1504 = vxor.u32 %v1378, 2147483648
    %v1505 = vxor.u32 %v1383, 2147483648
    %v1506 = vxor.u32 %v1386, 2147483648
    %v1507 = vxor.u32 %v1391, 2147483648
    %v1508 = vxor.u32 %v1394, 2147483648
    %v1509 = vxor.u32 %v1399, 2147483648
    %v1510 = vxor.u32 %v1402, 2147483648
    %v1511 = vxor.u32 %v1407, 2147483648
    %v1512 = vxor.u32 %v1410, 2147483648
    %v1513 = vxor.u32 %v1415, 2147483648
    %v1514 = vxor.u32 %v1418, 2147483648
    %v1515 = vxor.u32 %v1423, 2147483648
    %v1516 = vxor.u32 %v1426, 2147483648
    %v1517 = vxor.u32 %v1431, 2147483648
    %v1518 = vxor.u32 %v1434, 2147483648
    %v1519 = vxor.u32 %v1439, 2147483648
    %v1520 = vxor.u32 %v1442, 2147483648
    %v1521 = vxor.u32 %v1447, 2147483648
    %v1522 = vxor.u32 %v1450, 2147483648
    %v1523 = vxor.u32 %v1455, 2147483648
    %v1524 = vxor.u32 %v1458, 2147483648
    %v1525 = vmul.f32 %v1461, 1.442695
    %v1526 = vpow.pop %v1525
    %v1527 = vmul.f32 %v1462, 1.442695
    %v1528 = vpow.pop %v1527
    %v1529 = vmul.f32 %v1463, 1.442695
    %v1530 = vpow.pop %v1529
    %v1531 = vmul.f32 %v1464, 1.442695
    %v1532 = vpow.pop %v1531
    %v1533 = vmul.f32 %v1465, 1.442695
    %v1534 = vpow.pop %v1533
    %v1535 = vmul.f32 %v1466, 1.442695
    %v1536 = vpow.pop %v1535
    %v1537 = vmul.f32 %v1467, 1.442695
    %v1538 = vpow.pop %v1537
    %v1539 = vmul.f32 %v1468, 1.442695
    %v1540 = vpow.pop %v1539
    %v1541 = vmul.f32 %v1469, 1.442695
    %v1542 = vpow.pop %v1541
    %v1543 = vmul.f32 %v1470, 1.442695
    %v1544 = vpow.pop %v1543
    %v1545 = vmul.f32 %v1471, 1.442695
    %v1546 = vpow.pop %v1545
    %v1547 = vmul.f32 %v1472, 1.442695
    %v1548 = vpow.pop %v1547
    %v1549 = vmul.f32 %v1473, 1.442695
    %v1550 = vpow.pop %v1549
    %v1551 = vmul.f32 %v1474, 1.442695
    %v1552 = vpow.pop %v1551
    %v1553 = vmul.f32 %v1475, 1.442695
    %v1554 = vpow.pop %v1553
    %v1555 = vmul.f32 %v1476, 1.442695
    %v1556 = vpow.pop %v1555
    %v1557 = vmul.f32 %v1477, 1.442695
    %v1558 = vpow.pop %v1557
    %v1559 = vmul.f32 %v1478, 1.442695
    %v1560 = vpow.pop %v1559
    %v1561 = vmul.f32 %v1479, 1.442695
    %v1562 = vpow.pop %v1561
    %v1563 = vmul.f32 %v1480, 1.442695
    %v1564 = vpow.pop %v1563
    %v1565 = vmul.f32 %v1481, 1.442695
    %v1566 = vpow.pop %v1565
    %v1567 = vmul.f32 %v1482, 1.442695
    %v1568 = vpow.pop %v1567
    %v1569 = vmul.f32 %v1483, 1.442695
    %v1570 = vpow.pop %v1569
    %v1571 = vmul.f32 %v1484, 1.442695
    %v1572 = vpow.pop %v1571
    %v1573 = vmul.f32 %v1485, 1.442695
    %v1574 = vpow.pop %v1573
    %v1575 = vmul.f32 %v1486, 1.442695
    %v1576 = vpow.pop %v1575
    %v1577 = vmul.f32 %v1487, 1.442695
    %v1578 = vpow.pop %v1577
    %v1579 = vmul.f32 %v1488, 1.442695
    %v1580 = vpow.pop %v1579
    %v1581 = vmul.f32 %v1489, 1.442695
    %v1582 = vpow.pop %v1581
    %v1583 = vmul.f32 %v1490, 1.442695
    %v1584 = vpow.pop %v1583
    %v1585 = vmul.f32 %v1491, 1.442695
    %v1586 = vpow.pop %v1585
    %v1587 = vmul.f32 %v1492, 1.442695
    %v1588 = vpow.pop %v1587
    %v1589 = vmul.f32 %v1493, 1.442695
    %v1590 = vpow.pop %v1589
    %v1591 = vmul.f32 %v1494, 1.442695
    %v1592 = vpow.pop %v1591
    %v1593 = vmul.f32 %v1495, 1.442695
    %v1594 = vpow.pop %v1593
    %v1595 = vmul.f32 %v1496, 1.442695
    %v1596 = vpow.pop %v1595
    %v1597 = vmul.f32 %v1497, 1.442695
    %v1598 = vpow.pop %v1597
    %v1599 = vmul.f32 %v1498, 1.442695
    %v1600 = vpow.pop %v1599
    %v1601 = vmul.f32 %v1499, 1.442695
    %v1602 = vpow.pop %v1601
    %v1603 = vmul.f32 %v1500, 1.442695
    %v1604 = vpow.pop %v1603
    %v1605 = vmul.f32 %v1501, 1.442695
    %v1606 = vpow.pop %v1605
    %v1607 = vmul.f32 %v1502, 1.442695
    %v1608 = vpow.pop %v1607
    %v1609 = vmul.f32 %v1503, 1.442695
    %v1610 = vpow.pop %v1609
    %v1611 = vmul.f32 %v1504, 1.442695
    %v1612 = vpow.pop %v1611
    %v1613 = vmul.f32 %v1505, 1.442695
    %v1614 = vpow.pop %v1613
    %v1615 = vmul.f32 %v1506, 1.442695
    %v1616 = vpow.pop %v1615
    %v1617 = vmul.f32 %v1507, 1.442695
    %v1618 = vpow.pop %v1617
    %v1619 = vmul.f32 %v1508, 1.442695
    %v1620 = vpow.pop %v1619
    %v1621 = vmul.f32 %v1509, 1.442695
    %v1622 = vpow.pop %v1621
    %v1623 = vmul.f32 %v1510, 1.442695
    %v1624 = vpow.pop %v1623
    %v1625 = vmul.f32 %v1511, 1.442695
    %v1626 = vpow.pop %v1625
    %v1627 = vmul.f32 %v1512, 1.442695
    %v1628 = vpow.pop %v1627
    %v1629 = vmul.f32 %v1513, 1.442695
    %v1630 = vpow.pop %v1629
    %v1631 = vmul.f32 %v1514, 1.442695
    %v1632 = vpow.pop %v1631
    %v1633 = vmul.f32 %v1515, 1.442695
    %v1634 = vpow.pop %v1633
    %v1635 = vmul.f32 %v1516, 1.442695
    %v1636 = vpow.pop %v1635
    %v1637 = vmul.f32 %v1517, 1.442695
    %v1638 = vpow.pop %v1637
    %v1639 = vmul.f32 %v1518, 1.442695
    %v1640 = vpow.pop %v1639
    %v1641 = vmul.f32 %v1519, 1.442695
    %v1642 = vpow.pop %v1641
    %v1643 = vmul.f32 %v1520, 1.442695
    %v1644 = vpow.pop %v1643
    %v1645 = vmul.f32 %v1521, 1.442695
    %v1646 = vpow.pop %v1645
    %v1647 = vmul.f32 %v1522, 1.442695
    %v1648 = vpow.pop %v1647
    %v1649 = vmul.f32 %v1523, 1.442695
    %v1650 = vpow.pop %v1649
    %v1651 = vmul.f32 %v1524, 1.442695
    %v1652 = vpow.pop %v1651
    %v1653 = vadd.f32 %v1526, 1.0
    %v1654 = vadd.f32 %v1528, 1.0
    %v1655 = vadd.f32 %v1530, 1.0
    %v1656 = vadd.f32 %v1532, 1.0
    %v1657 = vadd.f32 %v1534, 1.0
    %v1658 = vadd.f32 %v1536, 1.0
    %v1659 = vadd.f32 %v1538, 1.0
    %v1660 = vadd.f32 %v1540, 1.0
    %v1661 = vadd.f32 %v1542, 1.0
    %v1662 = vadd.f32 %v1544, 1.0
    %v1663 = vadd.f32 %v1546, 1.0
    %v1664 = vadd.f32 %v1548, 1.0
    %v1665 = vadd.f32 %v1550, 1.0
    %v1666 = vadd.f32 %v1552, 1.0
    %v1667 = vadd.f32 %v1554, 1.0
    %v1668 = vadd.f32 %v1556, 1.0
    %v1669 = vadd.f32 %v1558, 1.0
    %v1670 = vadd.f32 %v1560, 1.0
    %v1671 = vadd.f32 %v1562, 1.0
    %v1672 = vadd.f32 %v1564, 1.0
    %v1673 = vadd.f32 %v1566, 1.0
    %v1674 = vadd.f32 %v1568, 1.0
    %v1675 = vadd.f32 %v1570, 1.0
    %v1676 = vadd.f32 %v1572, 1.0
    %v1677 = vadd.f32 %v1574, 1.0
    %v1678 = vadd.f32 %v1576, 1.0
    %v1679 = vadd.f32 %v1578, 1.0
    %v1680 = vadd.f32 %v1580, 1.0
    %v1681 = vadd.f32 %v1582, 1.0
    %v1682 = vadd.f32 %v1584, 1.0
    %v1683 = vadd.f32 %v1586, 1.0
    %v1684 = vadd.f32 %v1588, 1.0
    %v1685 = vadd.f32 %v1590, 1.0
    %v1686 = vadd.f32 %v1592, 1.0
    %v1687 = vadd.f32 %v1594, 1.0
    %v1688 = vadd.f32 %v1596, 1.0
    %v1689 = vadd.f32 %v1598, 1.0
    %v1690 = vadd.f32 %v1600, 1.0
    %v1691 = vadd.f32 %v1602, 1.0
    %v1692 = vadd.f32 %v1604, 1.0
    %v1693 = vadd.f32 %v1606, 1.0
    %v1694 = vadd.f32 %v1608, 1.0
    %v1695 = vadd.f32 %v1610, 1.0
    %v1696 = vadd.f32 %v1612, 1.0
    %v1697 = vadd.f32 %v1614, 1.0
    %v1698 = vadd.f32 %v1616, 1.0
    %v1699 = vadd.f32 %v1618, 1.0
    %v1700 = vadd.f32 %v1620, 1.0
    %v1701 = vadd.f32 %v1622, 1.0
    %v1702 = vadd.f32 %v1624, 1.0
    %v1703 = vadd.f32 %v1626, 1.0
    %v1704 = vadd.f32 %v1628, 1.0
    %v1705 = vadd.f32 %v1630, 1.0
    %v1706 = vadd.f32 %v1632, 1.0
    %v1707 = vadd.f32 %v1634, 1.0
    %v1708 = vadd.f32 %v1636, 1.0
    %v1709 = vadd.f32 %v1638, 1.0
    %v1710 = vadd.f32 %v1640, 1.0
    %v1711 = vadd.f32 %v1642, 1.0
    %v1712 = vadd.f32 %v1644, 1.0
    %v1713 = vadd.f32 %v1646, 1.0
    %v1714 = vadd.f32 %v1648, 1.0
    %v1715 = vadd.f32 %v1650, 1.0
    %v1716 = vadd.f32 %v1652, 1.0
    %v1717 = vrcp.pop %v1653
    %v1718 = vmul.f32 1.0, %v1717
    %v1719 = vrcp.pop %v1654
    %v1720 = vmul.f32 1.0, %v1719
    %v1721 = vrcp.pop %v1655
    %v1722 = vmul.f32 1.0, %v1721
    %v1723 = vrcp.pop %v1656
    %v1724 = vmul.f32 1.0, %v1723
    %v1725 = vrcp.pop %v1657
    %v1726 = vmul.f32 1.0, %v1725
    %v1727 = vrcp.pop %v1658
    %v1728 = vmul.f32 1.0, %v1727
    %v1729 = vrcp.pop %v1659
    %v1730 = vmul.f32 1.0, %v1729
    %v1731 = vrcp.pop %v1660
    %v1732 = vmul.f32 1.0, %v1731
    %v1733 = vrcp.pop %v1661
    %v1734 = vmul.f32 1.0, %v1733
    %v1735 = vrcp.pop %v1662
    %v1736 = vmul.f32 1.0, %v1735
    %v1737 = vrcp.pop %v1663
    %v1738 = vmul.f32 1.0, %v1737
    %v1739 = vrcp.pop %v1664
    %v1740 = vmul.f32 1.0, %v1739
    %v1741 = vrcp.pop %v1665
    %v1742 = vmul.f32 1.0, %v1741
    %v1743 = vrcp.pop %v1666
    %v1744 = vmul.f32 1.0, %v1743
    %v1745 = vrcp.pop %v1667
    %v1746 = vmul.f32 1.0, %v1745
    %v1747 = vrcp.pop %v1668
    %v1748 = vmul.f32 1.0, %v1747
    %v1749 = vrcp.pop %v1669
    %v1750 = vmul.f32 1.0, %v1749
    %v1751 = vrcp.pop %v1670
    %v1752 = vmul.f32 1.0, %v1751
    %v1753 = vrcp.pop %v1671
    %v1754 = vmul.f32 1.0, %v1753
    %v1755 = vrcp.pop %v1672
    %v1756 = vmul.f32 1.0, %v1755
    %v1757 = vrcp.pop %v1673
    %v1758 = vmul.f32 1.0, %v1757
    %v1759 = vrcp.pop %v1674
    %v1760 = vmul.f32 1.0, %v1759
    %v1761 = vrcp.pop %v1675
    %v1762 = vmul.f32 1.0, %v1761
    %v1763 = vrcp.pop %v1676
    %v1764 = vmul.f32 1.0, %v1763
    %v1765 = vrcp.pop %v1677
    %v1766 = vmul.f32 1.0, %v1765
    %v1767 = vrcp.pop %v1678
    %v1768 = vmul.f32 1.0, %v1767
    %v1769 = vrcp.pop %v1679
    %v1770 = vmul.f32 1.0, %v1769
    %v1771 = vrcp.pop %v1680
    %v1772 = vmul.f32 1.0, %v1771
    %v1773 = vrcp.pop %v1681
    %v1774 = vmul.f32 1.0, %v1773
    %v1775 = vrcp.pop %v1682
    %v1776 = vmul.f32 1.0, %v1775
    %v1777 = vrcp.pop %v1683
    %v1778 = vmul.f32 1.0, %v1777
    %v1779 = vrcp.pop %v1684
    %v1780 = vmul.f32 1.0, %v1779
    %v1781 = vrcp.pop %v1685
    %v1782 = vmul.f32 1.0, %v1781
    %v1783 = vrcp.pop %v1686
    %v1784 = vmul.f32 1.0, %v1783
    %v1785 = vrcp.pop %v1687
    %v1786 = vmul.f32 1.0, %v1785
    %v1787 = vrcp.pop %v1688
    %v1788 = vmul.f32 1.0, %v1787
    %v1789 = vrcp.pop %v1689
    %v1790 = vmul.f32 1.0, %v1789
    %v1791 = vrcp.pop %v1690
    %v1792 = vmul.f32 1.0, %v1791
    %v1793 = vrcp.pop %v1691
    %v1794 = vmul.f32 1.0, %v1793
    %v1795 = vrcp.pop %v1692
    %v1796 = vmul.f32 1.0, %v1795
    %v1797 = vrcp.pop %v1693
    %v1798 = vmul.f32 1.0, %v1797
    %v1799 = vrcp.pop %v1694
    %v1800 = vmul.f32 1.0, %v1799
    %v1801 = vrcp.pop %v1695
    %v1802 = vmul.f32 1.0, %v1801
    %v1803 = vrcp.pop %v1696
    %v1804 = vmul.f32 1.0, %v1803
    %v1805 = vrcp.pop %v1697
    %v1806 = vmul.f32 1.0, %v1805
    %v1807 = vrcp.pop %v1698
    %v1808 = vmul.f32 1.0, %v1807
    %v1809 = vrcp.pop %v1699
    %v1810 = vmul.f32 1.0, %v1809
    %v1811 = vrcp.pop %v1700
    %v1812 = vmul.f32 1.0, %v1811
    %v1813 = vrcp.pop %v1701
    %v1814 = vmul.f32 1.0, %v1813
    %v1815 = vrcp.pop %v1702
    %v1816 = vmul.f32 1.0, %v1815
    %v1817 = vrcp.pop %v1703
    %v1818 = vmul.f32 1.0, %v1817
    %v1819 = vrcp.pop %v1704
    %v1820 = vmul.f32 1.0, %v1819
    %v1821 = vrcp.pop %v1705
    %v1822 = vmul.f32 1.0, %v1821
    %v1823 = vrcp.pop %v1706
    %v1824 = vmul.f32 1.0, %v1823
    %v1825 = vrcp.pop %v1707
    %v1826 = vmul.f32 1.0, %v1825
    %v1827 = vrcp.pop %v1708
    %v1828 = vmul.f32 1.0, %v1827
    %v1829 = vrcp.pop %v1709
    %v1830 = vmul.f32 1.0, %v1829
    %v1831 = vrcp.pop %v1710
    %v1832 = vmul.f32 1.0, %v1831
    %v1833 = vrcp.pop %v1711
    %v1834 = vmul.f32 1.0, %v1833
    %v1835 = vrcp.pop %v1712
    %v1836 = vmul.f32 1.0, %v1835
    %v1837 = vrcp.pop %v1713
    %v1838 = vmul.f32 1.0, %v1837
    %v1839 = vrcp.pop %v1714
    %v1840 = vmul.f32 1.0, %v1839
    %v1841 = vrcp.pop %v1715
    %v1842 = vmul.f32 1.0, %v1841
    %v1843 = vrcp.pop %v1716
    %v1844 = vmul.f32 1.0, %v1843
    %1845 = vst [vmem:[#allocation2] sm:$0xff] %v1718
    %1846 = vst [vmem:[#allocation2 + $0x8] sm:$0xff] %v1720
    %1847 = vst [vmem:[#allocation2 + $0x10] sm:$0xff] %v1722
    %1848 = vst [vmem:[#allocation2 + $0x18] sm:$0xff] %v1724
    %1849 = vst [vmem:[#allocation2 + $0x20] sm:$0xff] %v1726
    %1850 = vst [vmem:[#allocation2 + $0x28] sm:$0xff] %v1728
    %1851 = vst [vmem:[#allocation2 + $0x30] sm:$0xff] %v1730
    %1852 = vst [vmem:[#allocation2 + $0x38] sm:$0xff] %v1732
    %1853 = vst [vmem:[#allocation2 + $0x40] sm:$0xff] %v1734
    %1854 = vst [vmem:[#allocation2 + $0x48] sm:$0xff] %v1736
    %1855 = vst [vmem:[#allocation2 + $0x50] sm:$0xff] %v1738
    %1856 = vst [vmem:[#allocation2 + $0x58] sm:$0xff] %v1740
    %1857 = vst [vmem:[#allocation2 + $0x60] sm:$0xff] %v1742
    %1858 = vst [vmem:[#allocation2 + $0x68] sm:$0xff] %v1744
    %1859 = vst [vmem:[#allocation2 + $0x70] sm:$0xff] %v1746
    %1860 = vst [vmem:[#allocation2 + $0x78] sm:$0xff] %v1748
    %1861 = vst [vmem:[#allocation2 + $0x80] sm:$0xff] %v1750
    %1862 = vst [vmem:[#allocation2 + $0x88] sm:$0xff] %v1752
    %1863 = vst [vmem:[#allocation2 + $0x90] sm:$0xff] %v1754
    %1864 = vst [vmem:[#allocation2 + $0x98] sm:$0xff] %v1756
    %1865 = vst [vmem:[#allocation2 + $0xa0] sm:$0xff] %v1758
    %1866 = vst [vmem:[#allocation2 + $0xa8] sm:$0xff] %v1760
    %1867 = vst [vmem:[#allocation2 + $0xb0] sm:$0xff] %v1762
    %1868 = vst [vmem:[#allocation2 + $0xb8] sm:$0xff] %v1764
    %1869 = vst [vmem:[#allocation2 + $0xc0] sm:$0xff] %v1766
    %1870 = vst [vmem:[#allocation2 + $0xc8] sm:$0xff] %v1768
    %1871 = vst [vmem:[#allocation2 + $0xd0] sm:$0xff] %v1770
    %1872 = vst [vmem:[#allocation2 + $0xd8] sm:$0xff] %v1772
    %1873 = vst [vmem:[#allocation2 + $0xe0] sm:$0xff] %v1774
    %1874 = vst [vmem:[#allocation2 + $0xe8] sm:$0xff] %v1776
    %1875 = vst [vmem:[#allocation2 + $0xf0] sm:$0xff] %v1778
    %1876 = vst [vmem:[#allocation2 + $0xf8] sm:$0xff] %v1780
    %1877 = vst [vmem:[#allocation2 + $0x100] sm:$0xff] %v1782
    %1878 = vst [vmem:[#allocation2 + $0x108] sm:$0xff] %v1784
    %1879 = vst [vmem:[#allocation2 + $0x110] sm:$0xff] %v1786
    %1880 = vst [vmem:[#allocation2 + $0x118] sm:$0xff] %v1788
    %1881 = vst [vmem:[#allocation2 + $0x120] sm:$0xff] %v1790
    %1882 = vst [vmem:[#allocation2 + $0x128] sm:$0xff] %v1792
    %1883 = vst [vmem:[#allocation2 + $0x130] sm:$0xff] %v1794
    %1884 = vst [vmem:[#allocation2 + $0x138] sm:$0xff] %v1796
    %1885 = vst [vmem:[#allocation2 + $0x140] sm:$0xff] %v1798
    %1886 = vst [vmem:[#allocation2 + $0x148] sm:$0xff] %v1800
    %1887 = vst [vmem:[#allocation2 + $0x150] sm:$0xff] %v1802
    %1888 = vst [vmem:[#allocation2 + $0x158] sm:$0xff] %v1804
    %1889 = vst [vmem:[#allocation2 + $0x160] sm:$0xff] %v1806
    %1890 = vst [vmem:[#allocation2 + $0x168] sm:$0xff] %v1808
    %1891 = vst [vmem:[#allocation2 + $0x170] sm:$0xff] %v1810
    %1892 = vst [vmem:[#allocation2 + $0x178] sm:$0xff] %v1812
    %1893 = vst [vmem:[#allocation2 + $0x180] sm:$0xff] %v1814
    %1894 = vst [vmem:[#allocation2 + $0x188] sm:$0xff] %v1816
    %1895 = vst [vmem:[#allocation2 + $0x190] sm:$0xff] %v1818
    %1896 = vst [vmem:[#allocation2 + $0x198] sm:$0xff] %v1820
    %1897 = vst [vmem:[#allocation2 + $0x1a0] sm:$0xff] %v1822
    %1898 = vst [vmem:[#allocation2 + $0x1a8] sm:$0xff] %v1824
    %1899 = vst [vmem:[#allocation2 + $0x1b0] sm:$0xff] %v1826
    %1900 = vst [vmem:[#allocation2 + $0x1b8] sm:$0xff] %v1828
    %1901 = vst [vmem:[#allocation2 + $0x1c0] sm:$0xff] %v1830
    %1902 = vst [vmem:[#allocation2 + $0x1c8] sm:$0xff] %v1832
    %1903 = vst [vmem:[#allocation2 + $0x1d0] sm:$0xff] %v1834
    %1904 = vst [vmem:[#allocation2 + $0x1d8] sm:$0xff] %v1836
    %1905 = vst [vmem:[#allocation2 + $0x1e0] sm:$0xff] %v1838
    %1906 = vst [vmem:[#allocation2 + $0x1e8] sm:$0xff] %v1840
    %1907 = vst [vmem:[#allocation2 + $0x1f0] sm:$0xff] %v1842
    %1908 = vst [vmem:[#allocation2 + $0x1f8] sm:$0xff] %v1844
    // Predicated region
    $region30: #{tpu_custom_call.1} parent=1 // pred_check
      _
    $region31: #{tpu_custom_call.1} parent=1 // pred_check_branch
      %1910 = sbr.rel (0) target = $region33
    $region32: #{tpu_custom_call.1} parent=1 // pred_region
      %s1912 = ssub.s32 8192, 8192
      %1913 = vsyncadd [#allocation3], %s1912
      %s1914 = sshll.u32 [#allocation2], 4
      %s1915 = int_to_ptr.vmem [resolvable:$true] %s1914
      %1920 = dma.vmem_to_hbm [thread:$0]  %s1915, 8192, %s7, [#allocation3], 128, 128, 8
    $region33: #{tpu_custom_call.1} parent=1 // pred_fallthru
      _
    // Predicated region
    $region34: #{tpu_custom_call.1} parent=1 // pred_check
      _
    $region35: #{tpu_custom_call.1} parent=1 // pred_check_branch
      %1922 = sbr.rel (0) target = $region37
    $region36: #{tpu_custom_call.1} parent=1 // pred_region
      %1923 = dma.done [#allocation3], 8192
    $region37: #{tpu_custom_call.1} parent=1 // pred_fallthru
      _
    %1924 = vsyncpa [#allocation3], 1

</llo_original>
